<compile_context>
chip_gen: v5e
topology: v5e:2x2
jax: 0.10.0
libtpu: 0.0.40
codegen_flags: <defaults>
</compile_context>

<pallas_src>
import functools
import math

import jax
import jax.numpy as jnp
from jax import lax
from jax.experimental import pallas as pl
from jax.experimental.pallas import tpu as pltpu

LN_EPS = 1e-5


def _layer_norm(x, gamma, beta):
    # E[x^2] - mean^2 variance form: one fewer full-tile subtract on the VALU
    # than the (x - m)^2 form; clamp guards tiny negative fp error.
    m = jnp.mean(x, axis=-1, keepdims=True)
    m2 = jnp.mean(x * x, axis=-1, keepdims=True)
    var = jnp.maximum(m2 - m * m, 0.0)
    return (x - m) * lax.rsqrt(var + LN_EPS) * gamma + beta


def edge_gnn_kernel(va_ref, bp_ref, ht_ref, e_ref, wc_ref,
                    gamma_h_ref, beta_h_ref, gamma_e_ref, beta_e_ref,
                    ho_ref, eo_ref, agg_ref):
    """One (batch, row-tile, col-tile) block per grid step.

    va_ref : (1, TJ, 2H) f32  fused [V | A] node projections for column rows j
    bp_ref : (1, TI, H)  f32  B node projection for row rows i
    ht_ref : (1, TI, H)       node embeddings of this row tile (residual)
    e_ref  : (1, TI, TJ, H)   edge embeddings block
    wc_ref : (H, H)           C weights, (in, out) so y = x @ W
    g*/b*  : (1, H)           LayerNorm affine params for h and e
    ho_ref : (1, TI, H)       node output (written only at the last col tile)
    eo_ref : (1, TI, TJ, H)   edge output block
    agg_ref: (TI, H) f32      VMEM accumulator for sum_j sigmoid(e_new)*Vh[j]
    """
    j = pl.program_id(2)
    TI = eo_ref.shape[1]
    TJ = eo_ref.shape[2]
    H = eo_ref.shape[3]

    va = va_ref[0]                                      # (TJ, 2H) f32
    Vh = va[:, :H]                                      # (TJ, H)
    Ah = va[:, H:]                                      # (TJ, H)
    Bh = bp_ref[0]                                      # (TI, H) f32
    e_blk = e_ref[0]                                    # (TI, TJ, H) in dtype

    # Edge projection: the big matmul.  bf16 operands stay MXU-native bf16
    # (accumulation is f32 via preferred_element_type).
    Ce = jnp.dot(e_blk.reshape(TI * TJ, H), wc_ref[...],
                 preferred_element_type=jnp.float32).reshape(TI, TJ, H)

    # e_new[i, j] = Ah[j] + Bh[i] + Ce[i, j]
    e_new = Ah[None, :, :] + Bh[:, None, :] + Ce        # (TI, TJ, H) f32
    gates = jax.nn.sigmoid(e_new)

    # Gated aggregation, accumulated across column tiles.
    @pl.when(j == 0)
    def _():
        agg_ref[...] = jnp.zeros_like(agg_ref)

    agg_ref[...] += jnp.sum(gates * Vh[None, :, :], axis=1)   # (TI, H) f32

    # e branch: LN + ReLU + residual, fused into the output store.  The
    # residual add / final store happen in the input dtype (bf16-friendly).
    en = jnp.maximum(_layer_norm(e_new, gamma_e_ref[...], beta_e_ref[...]), 0.0)
    eo_ref[0] = e_blk + en.astype(eo_ref.dtype)

    # h branch: finalize once all column tiles of this row tile are done.
    @pl.when(j == pl.num_programs(2) - 1)
    def _():
        h32 = ht_ref[0].astype(jnp.float32)
        hn = jnp.maximum(
            _layer_norm(h32 + agg_ref[...], gamma_h_ref[...], beta_h_ref[...]),
            0.0)
        ho_ref[0] = (h32 + hn).astype(ho_ref.dtype)


def _vmem_capacity_bytes():
    """Physical VMEM per TensorCore; conservative 64 MiB (v7x) fallback."""
    try:
        info = pltpu.get_tpu_info()
        cap = int(getattr(info, "vmem_capacity_bytes", 0) or 0)
        if cap > 0:
            return cap
    except Exception:
        pass
    return 64 * 1024 * 1024


def _vmem_estimate(ti, tj, H, e_itemsize, h_itemsize):
    """Honest per-step VMEM estimate for a (ti, tj) edge block."""
    e_blk = ti * tj * H
    return (
        4 * e_blk * e_itemsize          # e in + e out blocks, double-buffered
        + 5 * e_blk * 4                 # ~5 live f32 temps (e_new/gates/prod/en/LN)
        + 2 * tj * 2 * H * 4            # fused [V|A] block (f32), double-buffered
        + 2 * ti * H * 4                # B projection block (f32), double-buffered
        + 2 * ti * H * h_itemsize       # h residual tile, double-buffered
        + 2 * ti * H * h_itemsize       # h output tile, double-buffered
        + ti * H * 4                    # agg accumulator scratch
        + 2 * H * H * 4                 # Wc (generous, counted as f32)
        + 8 * H * 4                     # affine params
        + (4 << 20)                     # compiler internal scratch slack
    )


def _pick_tiles(N, H, e_itemsize, h_itemsize, vmem_capacity):
    """Largest (tile_i, tile_j) divisor pair of N fitting ~70% of VMEM."""
    budget = int(0.70 * vmem_capacity)
    cands = [t for t in range(N, 0, -1)
             if N % t == 0 and (t % 8 == 0 or t == N)]
    best = None   # (score, ti, tj)
    for ti in cands:
        for tj in cands:
            if _vmem_estimate(ti, tj, H, e_itemsize, h_itemsize) > budget:
                continue
            score = (ti * tj, min(ti, tj))   # biggest block, then square-ish
            if best is None or score > best[0]:
                best = (score, ti, tj)
    if best is None:           # pathological H; smallest legal tile
        return cands[-1], cands[-1]
    return best[1], best[2]


@functools.partial(jax.jit,
                   static_argnames=("tile_i", "tile_j", "donate_e",
                                    "vmem_limit"))
def _edge_gnn_call(h, e, W_vab, Wc, gamma_h, beta_h, gamma_e, beta_e,
                   tile_i, tile_j, donate_e, vmem_limit):
    B, N, H = h.shape
    n_i = N // tile_i
    n_j = N // tile_j

    # Hoisted node projections: one small XLA (B,N,H)@(H,3H) matmul (tiny vs.
    # the O(N^2 H) edge stream); removes the per-step recompute and the
    # duplicated full-h input DMA from the kernel.
    proj = jnp.dot(h, W_vab, preferred_element_type=jnp.float32)   # (B, N, 3H)
    va = proj[..., :2 * H]          # fused [V | A], streamed per column tile
    bp = proj[..., 2 * H:]          # B projection, streamed per row tile

    w_spec = pl.BlockSpec((H, H), lambda b, i, j: (0, 0))
    p_spec = pl.BlockSpec((1, H), lambda b, i, j: (0, 0))

    kwargs = {}
    if donate_e:
        # e input (index 3) aliases the e output (index 1): with a donated e
        # buffer this avoids a second full-size (B,N,N,H) HBM allocation.
        kwargs["input_output_aliases"] = {3: 1}

    ho, eo = pl.pallas_call(
        edge_gnn_kernel,
        out_shape=(
            jax.ShapeDtypeStruct((B, N, H), h.dtype),
            jax.ShapeDtypeStruct((B, N, N, H), e.dtype),
        ),
        grid=(B, n_i, n_j),
        in_specs=[
            pl.BlockSpec((1, tile_j, 2 * H), lambda b, i, j: (b, j, 0)),  # [V|A]
            pl.BlockSpec((1, tile_i, H), lambda b, i, j: (b, i, 0)),      # B proj
            pl.BlockSpec((1, tile_i, H), lambda b, i, j: (b, i, 0)),      # h tile
            pl.BlockSpec((1, tile_i, tile_j, H),
                         lambda b, i, j: (b, i, j, 0)),                   # e block
            w_spec,                                                       # Wc
            p_spec, p_spec, p_spec, p_spec,                               # LN affine
        ],
        out_specs=(
            pl.BlockSpec((1, tile_i, H), lambda b, i, j: (b, i, 0)),
            pl.BlockSpec((1, tile_i, tile_j, H),
                         lambda b, i, j: (b, i, j, 0)),
        ),
        scratch_shapes=[pltpu.VMEM((tile_i, H), jnp.float32)],
        compiler_params=pltpu.CompilerParams(
            dimension_semantics=("parallel", "parallel", "arbitrary"),
            vmem_limit_bytes=vmem_limit,
        ),
        **kwargs,
    )(va, bp, h, e, Wc, gamma_h, beta_h, gamma_e, beta_e)
    return ho, eo


def edge_gnn_forward(h, e, Wv, Wa, Wb, Wc,
                     gamma_h, beta_h, gamma_e, beta_e,
                     tile_i=None, tile_j=None, donate_e=False):
    B, N, H = h.shape
    assert e.shape == (B, N, N, H)
    cap = _vmem_capacity_bytes()
    if tile_i is None or tile_j is None:
        ti, tj = _pick_tiles(N, H, e.dtype.itemsize, h.dtype.itemsize, cap)
        tile_i = tile_i or ti
        tile_j = tile_j or tj
    assert N % tile_i == 0 and (tile_i % 8 == 0 or tile_i == N), \
        "tile_i must divide N and be a multiple of 8 (or equal N)"
    assert N % tile_j == 0 and (tile_j % 8 == 0 or tile_j == N), \
        "tile_j must divide N and be a multiple of 8 (or equal N)"

    est = _vmem_estimate(tile_i, tile_j, H, e.dtype.itemsize, h.dtype.itemsize)
    vmem_limit = int(min(max(est, 32 << 20), int(0.85 * cap)))

    # Fuse V, A, B into a single (H, 3H) weight -> one hoisted XLA matmul.
    W_vab = jnp.concatenate([Wv, Wa, Wb], axis=1)
    return _edge_gnn_call(h, e, W_vab, Wc,
                          gamma_h, beta_h, gamma_e, beta_e,
                          tile_i=int(tile_i), tile_j=int(tile_j),
                          donate_e=bool(donate_e), vmem_limit=vmem_limit)


def reference_forward(h, e, Wv, Wa, Wb, Wc, gamma_h, beta_h, gamma_e, beta_e):
    """Pure-JAX (f32) mirror of the PyTorch forward, for correctness checks."""
    f32 = jnp.float32
    h = h.astype(f32)
    e = e.astype(f32)
    Wv, Wa, Wb, Wc = (w.astype(f32) for w in (Wv, Wa, Wb, Wc))
    Vh = h @ Wv
    Ah = h @ Wa
    Bh = h @ Wb
    Ce = e @ Wc
    e_new = Ah[:, None, :, :] + Bh[:, :, None, :] + Ce
    gates = jax.nn.sigmoid(e_new)
    agg = jnp.sum(gates * Vh[:, None, :, :], axis=2)
    h_pre = h + agg

    def ln(x, g, b):
        m = jnp.mean(x, axis=-1, keepdims=True)
        v = jnp.mean((x - m) ** 2, axis=-1, keepdims=True)
        return (x - m) * lax.rsqrt(v + LN_EPS) * g + b

    h_out = h + jnp.maximum(ln(h_pre, gamma_h[0], beta_h[0]), 0.0)
    e_out = e + jnp.maximum(ln(e_new, gamma_e[0], beta_e[0]), 0.0)
    return h_out, e_out


if __name__ == "__main__":
    B, N, H = 2, 16, 128   # batch, n_nodes, hidden_dim (n_heads unused in fwd)

    key = jax.random.PRNGKey(0)
    k_h, k_e, k_wv, k_wa, k_wb, k_wc = jax.random.split(key, 6)

    h = jax.random.normal(k_h, (B, N, H), dtype=jnp.float32)
    e = jax.random.normal(k_e, (B, N, N, H), dtype=jnp.float32)

    scale = 1.0 / math.sqrt(H)
    # Linear weights stored as (in, out) so y = x @ W  (== torch x @ W.T).
    Wv = jax.random.normal(k_wv, (H, H), dtype=jnp.float32) * scale
    Wa = jax.random.normal(k_wa, (H, H), dtype=jnp.float32) * scale
    Wb = jax.random.normal(k_wb, (H, H), dtype=jnp.float32) * scale
    Wc = jax.random.normal(k_wc, (H, H), dtype=jnp.float32) * scale

    gamma_h = jnp.ones((1, H), dtype=jnp.float32)
    beta_h = jnp.zeros((1, H), dtype=jnp.float32)
    gamma_e = jnp.ones((1, H), dtype=jnp.float32)
    beta_e = jnp.zeros((1, H), dtype=jnp.float32)

    # --- f32 path, explicit 8x8 tiles -> grid (2, 2, 2): exercises both the
    # --- row tiling and the column-tile agg accumulator / finalize path. -----
    ho, eo = edge_gnn_forward(h, e, Wv, Wa, Wb, Wc,
                              gamma_h, beta_h, gamma_e, beta_e,
                              tile_i=8, tile_j=8)
    jax.block_until_ready((ho, eo))

    ho_ref, eo_ref = reference_forward(h, e, Wv, Wa, Wb, Wc,
                                       gamma_h, beta_h, gamma_e, beta_e)
    assert jnp.allclose(ho, ho_ref, atol=1e-3, rtol=1e-3), "h mismatch (f32)"
    assert jnp.allclose(eo, eo_ref, atol=1e-3, rtol=1e-3), "e mismatch (f32)"

    # --- bf16 path with auto tile picking and e-aliasing (halves HBM traffic
    # --- of the edge tensor; MXU-native bf16 matmul, f32 elementwise core). --
    bf16 = jnp.bfloat16
    h16, e16 = h.astype(bf16), e.astype(bf16)
    Wv16, Wa16, Wb16, Wc16 = (w.astype(bf16) for w in (Wv, Wa, Wb, Wc))
    ho16, eo16 = edge_gnn_forward(h16, e16, Wv16, Wa16, Wb16, Wc16,
                                  gamma_h, beta_h, gamma_e, beta_e,
                                  donate_e=True)
    jax.block_until_ready((ho16, eo16))

    ho_ref16, eo_ref16 = reference_forward(h16, e16, Wv16, Wa16, Wb16, Wc16,
                                           gamma_h, beta_h, gamma_e, beta_e)
    assert jnp.allclose(ho16.astype(jnp.float32), ho_ref16,
                        atol=5e-2, rtol=5e-2), "h mismatch (bf16)"
    assert jnp.allclose(eo16.astype(jnp.float32), eo_ref16,
                        atol=5e-2, rtol=5e-2), "e mismatch (bf16)"

    print("KERNEL_OK")
</pallas_src>

<mosaic_0001>
module attributes {stable_mosaic.version = 11 : i64} {
  func.func @edge_gnn_kernel(%arg0: i32, %arg1: i32, %arg2: i32, %arg3: memref<1x8x256xf32, #tpu.memory_space<vmem>>, %arg4: memref<1x8x128xf32, #tpu.memory_space<vmem>>, %arg5: memref<1x8x128xf32, #tpu.memory_space<vmem>>, %arg6: memref<1x8x8x128xf32, #tpu.memory_space<vmem>>, %arg7: memref<128x128xf32, #tpu.memory_space<vmem>>, %arg8: memref<1x128xf32, #tpu.memory_space<vmem>>, %arg9: memref<1x128xf32, #tpu.memory_space<vmem>>, %arg10: memref<1x128xf32, #tpu.memory_space<vmem>>, %arg11: memref<1x128xf32, #tpu.memory_space<vmem>>, %arg12: memref<1x8x128xf32, #tpu.memory_space<vmem>>, %arg13: memref<1x8x8x128xf32, #tpu.memory_space<vmem>>, %arg14: memref<8x128xf32, #tpu.memory_space<vmem>>) attributes {dimension_semantics = [#tpu.dimension_semantics<parallel>, #tpu.dimension_semantics<parallel>, #tpu.dimension_semantics<arbitrary>], iteration_bounds = array<i64: 2, 2, 2>, scalar_prefetch = 0 : i64, scratch_operands = 1 : i64, tpu.core_type = #tpu.core_type<tc>, window_params = [{transform_indices = @transform_0, window_bounds = array<i64: 1, 8, 256>}, {transform_indices = @transform_1, window_bounds = array<i64: 1, 8, 128>}, {transform_indices = @transform_2, window_bounds = array<i64: 1, 8, 128>}, {transform_indices = @transform_3, window_bounds = array<i64: 1, 8, 8, 128>}, {pipeline_mode = #tpu.pipeline_mode<synchronous>, transform_indices = @transform_4, window_bounds = array<i64: 128, 128>}, {pipeline_mode = #tpu.pipeline_mode<synchronous>, transform_indices = @transform_5, window_bounds = array<i64: 1, 128>}, {pipeline_mode = #tpu.pipeline_mode<synchronous>, transform_indices = @transform_6, window_bounds = array<i64: 1, 128>}, {pipeline_mode = #tpu.pipeline_mode<synchronous>, transform_indices = @transform_7, window_bounds = array<i64: 1, 128>}, {pipeline_mode = #tpu.pipeline_mode<synchronous>, transform_indices = @transform_8, window_bounds = array<i64: 1, 128>}, {transform_indices = @transform_9, window_bounds = array<i64: 1, 8, 128>}, {transform_indices = @transform_10, window_bounds = array<i64: 1, 8, 8, 128>}]} {
    %c0 = arith.constant 0 : index
    %c0_0 = arith.constant 0 : index
    %c0_1 = arith.constant 0 : index
    %0 = vector.load %arg3[%c0, %c0_0, %c0_1] : memref<1x8x256xf32, #tpu.memory_space<vmem>>, vector<1x8x256xf32>
    %1 = vector.shape_cast %0 : vector<1x8x256xf32> to vector<8x256xf32>
    %2 = vector.extract_strided_slice %1 {offsets = [0, 0], sizes = [8, 128], strides = [1, 1]} : vector<8x256xf32> to vector<8x128xf32>
    %3 = vector.extract_strided_slice %1 {offsets = [0, 128], sizes = [8, 128], strides = [1, 1]} : vector<8x256xf32> to vector<8x128xf32>
    %c0_2 = arith.constant 0 : index
    %c0_3 = arith.constant 0 : index
    %c0_4 = arith.constant 0 : index
    %4 = vector.load %arg4[%c0_2, %c0_3, %c0_4] : memref<1x8x128xf32, #tpu.memory_space<vmem>>, vector<1x8x128xf32>
    %5 = vector.shape_cast %4 : vector<1x8x128xf32> to vector<8x128xf32>
    %c0_5 = arith.constant 0 : index
    %c0_6 = arith.constant 0 : index
    %c0_7 = arith.constant 0 : index
    %c0_8 = arith.constant 0 : index
    %6 = vector.load %arg6[%c0_5, %c0_6, %c0_7, %c0_8] : memref<1x8x8x128xf32, #tpu.memory_space<vmem>>, vector<1x8x8x128xf32>
    %7 = vector.shape_cast %6 : vector<1x8x8x128xf32> to vector<8x8x128xf32>
    %8 = vector.shape_cast %7 : vector<8x8x128xf32> to vector<64x128xf32>
    %c0_9 = arith.constant 0 : index
    %c0_10 = arith.constant 0 : index
    %9 = vector.load %arg7[%c0_9, %c0_10] : memref<128x128xf32, #tpu.memory_space<vmem>>, vector<128x128xf32>
    %cst = arith.constant dense<0.000000e+00> : vector<64x128xf32>
    %10 = tpu.matmul %8, %9, %cst {dimension_numbers = #tpu.dot_dimension_numbers<[1], [0], [0], [1], [0, 0, 1, 1], [], []>} : vector<64x128xf32>, vector<128x128xf32>, vector<64x128xf32> -> vector<64x128xf32>
    %11 = vector.shape_cast %10 : vector<64x128xf32> to vector<8x8x128xf32>
    %12 = vector.shape_cast %3 : vector<8x128xf32> to vector<1x8x128xf32>
    %13 = vector.shape_cast %5 : vector<8x128xf32> to vector<8x1x128xf32>
    %14 = vector.broadcast %12 : vector<1x8x128xf32> to vector<8x8x128xf32>
    %15 = vector.broadcast %13 : vector<8x1x128xf32> to vector<8x8x128xf32>
    %16 = arith.addf %14, %15 : vector<8x8x128xf32>
    %17 = arith.addf %16, %11 : vector<8x8x128xf32>
    %18 = arith.negf %17 : vector<8x8x128xf32>
    %19 = math.exp %18 : vector<8x8x128xf32>
    %cst_11 = arith.constant 1.000000e+00 : f32
    %20 = vector.broadcast %cst_11 : f32 to vector<8x8x128xf32>
    %21 = arith.addf %20, %19 : vector<8x8x128xf32>
    %22 = arith.divf %20, %21 : vector<8x8x128xf32>
    %c0_i32 = arith.constant 0 : i32
    %23 = arith.cmpi eq, %arg2, %c0_i32 : i32
    %24 = arith.extui %23 : i1 to i32
    %c0_i32_12 = arith.constant 0 : i32
    %25 = arith.cmpi ne, %24, %c0_i32_12 : i32
    scf.if %25 {
      %cst_34 = arith.constant 0.000000e+00 : f32
      %70 = vector.broadcast %cst_34 : f32 to vector<8x128xf32>
      %c0_35 = arith.constant 0 : index
      %c0_36 = arith.constant 0 : index
      %71 = vector.load %arg14[%c0_35, %c0_36] : memref<8x128xf32, #tpu.memory_space<vmem>>, vector<8x128xf32>
      tpu.vector_store %arg14[%c0_35, %c0_36], %70 {strides = array<i32>} : memref<8x128xf32, #tpu.memory_space<vmem>>, vector<8x128xf32>,
    } else {
    }
    %c0_13 = arith.constant 0 : index
    %c0_14 = arith.constant 0 : index
    %26 = vector.load %arg14[%c0_13, %c0_14] : memref<8x128xf32, #tpu.memory_space<vmem>>, vector<8x128xf32>
    %27 = vector.shape_cast %2 : vector<8x128xf32> to vector<1x8x128xf32>
    %28 = vector.broadcast %27 : vector<1x8x128xf32> to vector<8x8x128xf32>
    %29 = arith.mulf %22, %28 : vector<8x8x128xf32>
    %cst_15 = arith.constant dense<0.000000e+00> : vector<8x128xf32>
    %30 = vector.multi_reduction <add>, %29, %cst_15 [1] : vector<8x8x128xf32> to vector<8x128xf32>
    %31 = arith.addf %26, %30 : vector<8x128xf32>
    %c0_16 = arith.constant 0 : index
    %c0_17 = arith.constant 0 : index
    %32 = vector.load %arg14[%c0_16, %c0_17] : memref<8x128xf32, #tpu.memory_space<vmem>>, vector<8x128xf32>
    tpu.vector_store %arg14[%c0_16, %c0_17], %31 {strides = array<i32>} : memref<8x128xf32, #tpu.memory_space<vmem>>, vector<8x128xf32>,
    %c0_18 = arith.constant 0 : index
    %c0_19 = arith.constant 0 : index
    %33 = vector.load %arg10[%c0_18, %c0_19] : memref<1x128xf32, #tpu.memory_space<vmem>>, vector<1x128xf32>
    %c0_20 = arith.constant 0 : index
    %c0_21 = arith.constant 0 : index
    %34 = vector.load %arg11[%c0_20, %c0_21] : memref<1x128xf32, #tpu.memory_space<vmem>>, vector<1x128xf32>
    %cst_22 = arith.constant dense<0.000000e+00> : vector<8x8xf32>
    %35 = vector.multi_reduction <add>, %17, %cst_22 [2] : vector<8x8x128xf32> to vector<8x8xf32>
    %36 = vector.shape_cast %35 : vector<8x8xf32> to vector<8x8x1xf32>
    %cst_23 = arith.constant 1.280000e+02 : f32
    %37 = vector.broadcast %cst_23 : f32 to vector<8x8x1xf32>
    %38 = arith.divf %36, %37 : vector<8x8x1xf32>
    %39 = arith.mulf %17, %17 : vector<8x8x128xf32>
    %cst_24 = arith.constant dense<0.000000e+00> : vector<8x8xf32>
    %40 = vector.multi_reduction <add>, %39, %cst_24 [2] : vector<8x8x128xf32> to vector<8x8xf32>
    %41 = vector.shape_cast %40 : vector<8x8xf32> to vector<8x8x1xf32>
    %cst_25 = arith.constant 1.280000e+02 : f32
    %42 = vector.broadcast %cst_25 : f32 to vector<8x8x1xf32>
    %43 = arith.divf %41, %42 : vector<8x8x1xf32>
    %44 = arith.mulf %38, %38 : vector<8x8x1xf32>
    %45 = arith.subf %43, %44 : vector<8x8x1xf32>
    %cst_26 = arith.constant 0.000000e+00 : f32
    %46 = vector.broadcast %cst_26 : f32 to vector<8x8x1xf32>
    %47 = arith.maximumf %45, %46 : vector<8x8x1xf32>
    %48 = vector.broadcast %38 : vector<8x8x1xf32> to vector<8x8x128xf32>
    %49 = arith.subf %17, %48 : vector<8x8x128xf32>
    %cst_27 = arith.constant 9.99999974E-6 : f32
    %50 = vector.broadcast %cst_27 : f32 to vector<8x8x1xf32>
    %51 = arith.addf %47, %50 : vector<8x8x1xf32>
    %52 = math.rsqrt %51 : vector<8x8x1xf32>
    %53 = vector.broadcast %52 : vector<8x8x1xf32> to vector<8x8x128xf32>
    %54 = arith.mulf %49, %53 : vector<8x8x128xf32>
    %55 = vector.shape_cast %33 : vector<1x128xf32> to vector<1x1x128xf32>
    %56 = vector.broadcast %55 : vector<1x1x128xf32> to vector<8x8x128xf32>
    %57 = arith.mulf %54, %56 : vector<8x8x128xf32>
    %58 = vector.shape_cast %34 : vector<1x128xf32> to vector<1x1x128xf32>
    %59 = vector.broadcast %58 : vector<1x1x128xf32> to vector<8x8x128xf32>
    %60 = arith.addf %57, %59 : vector<8x8x128xf32>
    %cst_28 = arith.constant 0.000000e+00 : f32
    %61 = vector.broadcast %cst_28 : f32 to vector<8x8x128xf32>
    %62 = arith.maximumf %60, %61 : vector<8x8x128xf32>
    %63 = arith.addf %7, %62 : vector<8x8x128xf32>
    %c0_29 = arith.constant 0 : index
    %c0_30 = arith.constant 0 : index
    %c0_31 = arith.constant 0 : index
    %c0_32 = arith.constant 0 : index
    %64 = vector.load %arg13[%c0_29, %c0_30, %c0_31, %c0_32] : memref<1x8x8x128xf32, #tpu.memory_space<vmem>>, vector<1x8x8x128xf32>
    %65 = vector.shape_cast %64 : vector<1x8x8x128xf32> to vector<8x8x128xf32>
    %66 = vector.shape_cast %63 : vector<8x8x128xf32> to vector<1x8x8x128xf32>
    tpu.vector_store %arg13[%c0_29, %c0_30, %c0_31, %c0_32], %66 {strides = array<i32>} : memref<1x8x8x128xf32, #tpu.memory_space<vmem>>, vector<1x8x8x128xf32>,
    %c1_i32 = arith.constant 1 : i32
    %67 = arith.cmpi eq, %arg2, %c1_i32 : i32
    %68 = arith.extui %67 : i1 to i32
    %c0_i32_33 = arith.constant 0 : i32
    %69 = arith.cmpi ne, %68, %c0_i32_33 : i32
    scf.if %69 {
      %c0_34 = arith.constant 0 : index
      %c0_35 = arith.constant 0 : index
      %c0_36 = arith.constant 0 : index
      %70 = vector.load %arg5[%c0_34, %c0_35, %c0_36] : memref<1x8x128xf32, #tpu.memory_space<vmem>>, vector<1x8x128xf32>
      %71 = vector.shape_cast %70 : vector<1x8x128xf32> to vector<8x128xf32>
      %c0_37 = arith.constant 0 : index
      %c0_38 = arith.constant 0 : index
      %72 = vector.load %arg14[%c0_37, %c0_38] : memref<8x128xf32, #tpu.memory_space<vmem>>, vector<8x128xf32>
      %73 = arith.addf %71, %72 : vector<8x128xf32>
      %c0_39 = arith.constant 0 : index
      %c0_40 = arith.constant 0 : index
      %74 = vector.load %arg8[%c0_39, %c0_40] : memref<1x128xf32, #tpu.memory_space<vmem>>, vector<1x128xf32>
      %c0_41 = arith.constant 0 : index
      %c0_42 = arith.constant 0 : index
      %75 = vector.load %arg9[%c0_41, %c0_42] : memref<1x128xf32, #tpu.memory_space<vmem>>, vector<1x128xf32>
      %cst_43 = arith.constant dense<0.000000e+00> : vector<8xf32>
      %76 = vector.multi_reduction <add>, %73, %cst_43 [1] : vector<8x128xf32> to vector<8xf32>
      %77 = vector.shape_cast %76 : vector<8xf32> to vector<8x1xf32>
      %cst_44 = arith.constant 1.280000e+02 : f32
      %78 = vector.broadcast %cst_44 : f32 to vector<8x1xf32>
      %79 = arith.divf %77, %78 : vector<8x1xf32>
      %80 = arith.mulf %73, %73 : vector<8x128xf32>
      %cst_45 = arith.constant dense<0.000000e+00> : vector<8xf32>
      %81 = vector.multi_reduction <add>, %80, %cst_45 [1] : vector<8x128xf32> to vector<8xf32>
      %82 = vector.shape_cast %81 : vector<8xf32> to vector<8x1xf32>
      %cst_46 = arith.constant 1.280000e+02 : f32
      %83 = vector.broadcast %cst_46 : f32 to vector<8x1xf32>
      %84 = arith.divf %82, %83 : vector<8x1xf32>
      %85 = arith.mulf %79, %79 : vector<8x1xf32>
      %86 = arith.subf %84, %85 : vector<8x1xf32>
      %cst_47 = arith.constant 0.000000e+00 : f32
      %87 = vector.broadcast %cst_47 : f32 to vector<8x1xf32>
      %88 = arith.maximumf %86, %87 : vector<8x1xf32>
      %89 = vector.broadcast %79 : vector<8x1xf32> to vector<8x128xf32>
      %90 = arith.subf %73, %89 : vector<8x128xf32>
      %cst_48 = arith.constant 9.99999974E-6 : f32
      %91 = vector.broadcast %cst_48 : f32 to vector<8x1xf32>
      %92 = arith.addf %88, %91 : vector<8x1xf32>
      %93 = math.rsqrt %92 : vector<8x1xf32>
      %94 = vector.broadcast %93 : vector<8x1xf32> to vector<8x128xf32>
      %95 = arith.mulf %90, %94 : vector<8x128xf32>
      %96 = vector.broadcast %74 : vector<1x128xf32> to vector<8x128xf32>
      %97 = arith.mulf %95, %96 : vector<8x128xf32>
      %98 = vector.broadcast %75 : vector<1x128xf32> to vector<8x128xf32>
      %99 = arith.addf %97, %98 : vector<8x128xf32>
      %cst_49 = arith.constant 0.000000e+00 : f32
      %100 = vector.broadcast %cst_49 : f32 to vector<8x128xf32>
      %101 = arith.maximumf %99, %100 : vector<8x128xf32>
      %102 = arith.addf %71, %101 : vector<8x128xf32>
      %c0_50 = arith.constant 0 : index
      %c0_51 = arith.constant 0 : index
      %c0_52 = arith.constant 0 : index
      %103 = vector.load %arg12[%c0_50, %c0_51, %c0_52] : memref<1x8x128xf32, #tpu.memory_space<vmem>>, vector<1x8x128xf32>
      %104 = vector.shape_cast %103 : vector<1x8x128xf32> to vector<8x128xf32>
      %105 = vector.shape_cast %102 : vector<8x128xf32> to vector<1x8x128xf32>
      tpu.vector_store %arg12[%c0_50, %c0_51, %c0_52], %105 {strides = array<i32>} : memref<1x8x128xf32, #tpu.memory_space<vmem>>, vector<1x8x128xf32>,
    } else {
    }
    return
  }
  func.func @transform_0(%arg0: i32, %arg1: i32, %arg2: i32) -> (i32, i32, i32) {
    %c0_i32 = arith.constant 0 : i32
    %c0_i32_0 = arith.constant 0 : i32
    return %arg0, %arg2, %c0_i32 : i32, i32, i32
  }
  func.func @transform_1(%arg0: i32, %arg1: i32, %arg2: i32) -> (i32, i32, i32) {
    %c0_i32 = arith.constant 0 : i32
    %c0_i32_0 = arith.constant 0 : i32
    return %arg0, %arg1, %c0_i32 : i32, i32, i32
  }
  func.func @transform_2(%arg0: i32, %arg1: i32, %arg2: i32) -> (i32, i32, i32) {
    %c0_i32 = arith.constant 0 : i32
    %c0_i32_0 = arith.constant 0 : i32
    return %arg0, %arg1, %c0_i32 : i32, i32, i32
  }
  func.func @transform_3(%arg0: i32, %arg1: i32, %arg2: i32) -> (i32, i32, i32, i32) {
    %c0_i32 = arith.constant 0 : i32
    %c0_i32_0 = arith.constant 0 : i32
    return %arg0, %arg1, %arg2, %c0_i32 : i32, i32, i32, i32
  }
  func.func @transform_4(%arg0: i32, %arg1: i32, %arg2: i32) -> (i32, i32) {
    %c0_i32 = arith.constant 0 : i32
    %c0_i32_0 = arith.constant 0 : i32
    %c0_i32_1 = arith.constant 0 : i32
    return %c0_i32, %c0_i32_0 : i32, i32
  }
  func.func @transform_5(%arg0: i32, %arg1: i32, %arg2: i32) -> (i32, i32) {
    %c0_i32 = arith.constant 0 : i32
    %c0_i32_0 = arith.constant 0 : i32
    %c0_i32_1 = arith.constant 0 : i32
    return %c0_i32, %c0_i32_0 : i32, i32
  }
  func.func @transform_6(%arg0: i32, %arg1: i32, %arg2: i32) -> (i32, i32) {
    %c0_i32 = arith.constant 0 : i32
    %c0_i32_0 = arith.constant 0 : i32
    %c0_i32_1 = arith.constant 0 : i32
    return %c0_i32, %c0_i32_0 : i32, i32
  }
  func.func @transform_7(%arg0: i32, %arg1: i32, %arg2: i32) -> (i32, i32) {
    %c0_i32 = arith.constant 0 : i32
    %c0_i32_0 = arith.constant 0 : i32
    %c0_i32_1 = arith.constant 0 : i32
    return %c0_i32, %c0_i32_0 : i32, i32
  }
  func.func @transform_8(%arg0: i32, %arg1: i32, %arg2: i32) -> (i32, i32) {
    %c0_i32 = arith.constant 0 : i32
    %c0_i32_0 = arith.constant 0 : i32
    %c0_i32_1 = arith.constant 0 : i32
    return %c0_i32, %c0_i32_0 : i32, i32
  }
  func.func @transform_9(%arg0: i32, %arg1: i32, %arg2: i32) -> (i32, i32, i32) {
    %c0_i32 = arith.constant 0 : i32
    %c0_i32_0 = arith.constant 0 : i32
    return %arg0, %arg1, %c0_i32 : i32, i32, i32
  }
  func.func @transform_10(%arg0: i32, %arg1: i32, %arg2: i32) -> (i32, i32, i32, i32) {
    %c0_i32 = arith.constant 0 : i32
    %c0_i32_0 = arith.constant 0 : i32
    return %arg0, %arg1, %arg2, %c0_i32 : i32, i32, i32, i32
  }
}

</mosaic_0001>

<llo_original>
// kernel: _edge_gnn_call.1
$region0: #{_edge_gnn_call.1}
  #allocation0 [shape = 'u32[]', space=smem, size = 0x4, offset = 0x4, fixed_abs, tag = 'smem constant byte address 0x4 - core index']
  #allocation1 [shape = 'u32[72,128]{1,0:T(1,128)}', space=vmem, size = 0x9000, scoped, tag = 'internal scratch']
  #allocation2 [shape = 'f32[8,128]{1,0:T(8,128)}', space=vmem, size = 0x1000, scoped, tag = 'scratch operand']
  %s0 = inlined_call_operand.vmem [shape: f32[2,16,256], index: 0, kind: input, shape index: {}]
  %s1 = inlined_call_operand.vmem [shape: f32[2,16,128], index: 1, kind: input, shape index: {}]
  %s2 = inlined_call_operand.vmem [shape: f32[2,16,128], index: 2, kind: input, shape index: {}]
  %s3 = inlined_call_operand.vmem [shape: f32[2,16,16,128], index: 3, kind: input, shape index: {}]
  %s4 = inlined_call_operand.vmem [shape: f32[128,128], index: 4, kind: input, shape index: {}]
  %s5 = inlined_call_operand.vmem [shape: f32[1,128], index: 5, kind: input, shape index: {}]
  %s6 = inlined_call_operand.vmem [shape: f32[1,128], index: 6, kind: input, shape index: {}]
  %s7 = inlined_call_operand.vmem [shape: f32[1,128], index: 7, kind: input, shape index: {}]
  %s8 = inlined_call_operand.vmem [shape: f32[1,128], index: 8, kind: input, shape index: {}]
  %s9 = inlined_call_operand.hbm [shape: f32[2,16,128], index: 9, kind: output, shape index: {0}]
  %s10 = inlined_call_operand.hbm [shape: f32[2,16,16,128], index: 10, kind: output, shape index: {1}]
  %11 = xla_tuple %s9, %s10
  %s12 = sld [smem:[#allocation0]]
  $region123: #{_edge_gnn_call.1} parent=0
    _
  %s14 = ssub.s32 1, %s12
  %s15 = scalar_select 0, %s14, %s12
  $region1: #{_edge_gnn_call.1} parent=0
    #allocation3 [shape = 'u8[65536]{0}', space=vmem, size = 0x10000, scoped, tag = 'input window, operand 3']
    #allocation4 [shape = 'u8[8192]{0}', space=vmem, size = 0x2000, scoped, tag = 'output window, operand 0']
    #allocation5 [shape = 's32[2]{0}', space=sflag, size = 0x8, scoped, tag = 'scoped memory for _edge_gnn_call.1']
    #allocation6 [shape = 'u8[65536]{0}', space=vmem, size = 0x10000, scoped, tag = 'output window, operand 1']
    #allocation7 [shape = 's32[2]{0}', space=sflag, size = 0x8, scoped, tag = 'scoped memory for _edge_gnn_call.1']
    %16 = vsyncpa [#allocation5], 0
    %s17 = scalar_lea.sflag [#allocation5], 1
    %18 = vsyncpa %s17, 0
    %19 = vsyncpa [#allocation7], 0
    %s20 = scalar_lea.sflag [#allocation7], 1
    %21 = vsyncpa %s20, 0
    loop: start=0, step=1, limit=10
    $region2: #{_edge_gnn_call.1} parent=1 // loop_pre_header
      _
    $region3: #{_edge_gnn_call.1} parent=1 // loop_header
      %s23 = sphi 0, %s27
      %p24 = scmp.ge.s32.totalorder %s23, 10
      %s30 = sphi 0, %s49
      %s31 = sphi 0, %s45
      %s32 = sphi 0, %s41
      %s33 = sphi 0, %s30
      %s34 = sphi 0, %s31
      %s35 = sphi 0, %s32
      %s36 = sphi 0, %s33
      %s37 = sphi 0, %s34
      %s38 = sphi 0, %s35
      %s54 = sphi 0, %s56
      %s57 = sphi 0, %s54
      %s58 = sphi 0, %s57
      %s74 = sphi 0, %s58
      %s82 = sphi 0, %s84
      %s85 = sphi 0, %s82
      %s86 = sphi 0, %s85
      %s102 = sphi 0, %s86
      %s110 = sphi 0, %s112
      %s113 = sphi 0, %s110
      %s114 = sphi 0, %s113
      %s130 = sphi 0, %s114
      %s140 = sphi 0, %s142
      %s143 = sphi 0, %s140
      %s144 = sphi 0, %s143
      %s160 = sphi 0, %s144
      %s164 = sphi 0, %s164
      %s166 = sphi 0, %s164
      %s167 = sphi 0, %s166
      %s181 = sphi 0, %s167
      %s185 = sphi 0, %s185
      %s187 = sphi 0, %s185
      %s188 = sphi 0, %s187
      %s202 = sphi 0, %s188
      %s206 = sphi 0, %s206
      %s208 = sphi 0, %s206
      %s209 = sphi 0, %s208
      %s223 = sphi 0, %s209
      %s227 = sphi 0, %s227
      %s229 = sphi 0, %s227
      %s230 = sphi 0, %s229
      %s244 = sphi 0, %s230
      %s248 = sphi 0, %s248
      %s250 = sphi 0, %s248
      %s251 = sphi 0, %s250
      %s265 = sphi 0, %s251
      %s273 = sphi 0, %s275
      %s276 = sphi 0, %s273
      %s277 = sphi 0, %s276
      %s293 = sphi 0, %s277
      %s303 = sphi 0, %s305
      %s306 = sphi 0, %s303
      %s307 = sphi 0, %s306
      %s323 = sphi 0, %s307
    $region4: #{_edge_gnn_call.1} parent=1 // loop_header_branch
      %26 = sbr.rel (%p24) target = $region8
    $region5: #{_edge_gnn_call.1} parent=1 // loop_body
      %s28 = ssub.s32 %s23, 1
      %s29 = ssub.s32 %s23, 2
      %s39 = sadd.s32 1, %s32
      %p40 = scmp.ge.s32.totalorder %s39, 2
      %s41 = scalar_select %p40, 0, %s39
      %s42 = sadd.s32 1, %s31
      %s43 = scalar_select %p40, %s42, %s31
      %p44 = scmp.ge.s32.totalorder %s43, 2
      %s45 = scalar_select %p44, 0, %s43
      %s46 = sadd.s32 1, %s30
      %s47 = scalar_select %p44, %s46, %s30
      %p48 = scmp.ge.s32.totalorder %s47, 2
      %s49 = scalar_select %p48, 0, %s47
      %s50 = ssub.s32 %s30, %s49
      %s51 = ssub.s32 %s32, %s41
      %s52 = sor.u32 %s50, %s51
      %p53 = scmp.eq.s32.totalorder %s52, 0
      %s55 = sadd.s32 %s54, 1
      %s56 = scalar_select %p53, %s54, %s55
      %p59 = pneg %p53
      %p60 = scmp.eq.s32.totalorder %s23, 7
      %p61 = por %p59, %p60
      %p62 = scmp.ne.s32.totalorder %s54, %s57
      %p63 = scmp.eq.s32.totalorder %s23, 0
      %p64 = por %p62, %p63
      %p65 = scmp.ne.s32.totalorder %s54, %s57
      %p66 = scmp.eq.s32.totalorder %s28, 7
      %p67 = por %p65, %p66
      %p68 = scmp.ne.s32.totalorder %s57, %s58
      %p69 = scmp.eq.s32.totalorder %s28, 0
      %p70 = por %p68, %p69
      %p71 = scmp.ne.s32.totalorder %s57, %s58
      %p72 = scmp.eq.s32.totalorder %s29, 7
      %p73 = por %p71, %p72
      %p75 = scmp.ne.s32.totalorder %s58, %s74
      %p76 = scmp.eq.s32.totalorder %s29, 0
      %p77 = por %p75, %p76
      %s78 = ssub.s32 %s30, %s49
      %s79 = ssub.s32 %s31, %s45
      %s80 = sor.u32 %s78, %s79
      %p81 = scmp.eq.s32.totalorder %s80, 0
      %s83 = sadd.s32 %s82, 1
      %s84 = scalar_select %p81, %s82, %s83
      %p87 = pneg %p81
      %p88 = scmp.eq.s32.totalorder %s23, 7
      %p89 = por %p87, %p88
      %p90 = scmp.ne.s32.totalorder %s82, %s85
      %p91 = scmp.eq.s32.totalorder %s23, 0
      %p92 = por %p90, %p91
      %p93 = scmp.ne.s32.totalorder %s82, %s85
      %p94 = scmp.eq.s32.totalorder %s28, 7
      %p95 = por %p93, %p94
      %p96 = scmp.ne.s32.totalorder %s85, %s86
      %p97 = scmp.eq.s32.totalorder %s28, 0
      %p98 = por %p96, %p97
      %p99 = scmp.ne.s32.totalorder %s85, %s86
      %p100 = scmp.eq.s32.totalorder %s29, 7
      %p101 = por %p99, %p100
      %p103 = scmp.ne.s32.totalorder %s86, %s102
      %p104 = scmp.eq.s32.totalorder %s29, 0
      %p105 = por %p103, %p104
      %s106 = ssub.s32 %s30, %s49
      %s107 = ssub.s32 %s31, %s45
      %s108 = sor.u32 %s106, %s107
      %p109 = scmp.eq.s32.totalorder %s108, 0
      %s111 = sadd.s32 %s110, 1
      %s112 = scalar_select %p109, %s110, %s111
      %p115 = pneg %p109
      %p116 = scmp.eq.s32.totalorder %s23, 7
      %p117 = por %p115, %p116
      %p118 = scmp.ne.s32.totalorder %s110, %s113
      %p119 = scmp.eq.s32.totalorder %s23, 0
      %p120 = por %p118, %p119
      %p121 = scmp.ne.s32.totalorder %s110, %s113
      %p122 = scmp.eq.s32.totalorder %s28, 7
      %p123 = por %p121, %p122
      %p124 = scmp.ne.s32.totalorder %s113, %s114
      %p125 = scmp.eq.s32.totalorder %s28, 0
      %p126 = por %p124, %p125
      %p127 = scmp.ne.s32.totalorder %s113, %s114
      %p128 = scmp.eq.s32.totalorder %s29, 7
      %p129 = por %p127, %p128
      %p131 = scmp.ne.s32.totalorder %s114, %s130
      %p132 = scmp.eq.s32.totalorder %s29, 0
      %p133 = por %p131, %p132
      %s134 = ssub.s32 %s30, %s49
      %s135 = ssub.s32 %s31, %s45
      %s136 = sor.u32 %s134, %s135
      %s137 = ssub.s32 %s32, %s41
      %s138 = sor.u32 %s136, %s137
      %p139 = scmp.eq.s32.totalorder %s138, 0
      %s141 = sadd.s32 %s140, 1
      %s142 = scalar_select %p139, %s140, %s141
      %p145 = pneg %p139
      %p146 = scmp.eq.s32.totalorder %s23, 7
      %p147 = por %p145, %p146
      %p148 = scmp.ne.s32.totalorder %s140, %s143
      %p149 = scmp.eq.s32.totalorder %s23, 0
      %p150 = por %p148, %p149
      %p151 = scmp.ne.s32.totalorder %s140, %s143
      %p152 = scmp.eq.s32.totalorder %s28, 7
      %p153 = por %p151, %p152
      %p154 = scmp.ne.s32.totalorder %s143, %s144
      %p155 = scmp.eq.s32.totalorder %s28, 0
      %p156 = por %p154, %p155
      %p157 = scmp.ne.s32.totalorder %s143, %s144
      %p158 = scmp.eq.s32.totalorder %s29, 7
      %p159 = por %p157, %p158
      %p161 = scmp.ne.s32.totalorder %s144, %s160
      %p162 = scmp.eq.s32.totalorder %s29, 0
      %p163 = por %p161, %p162
      %s165 = sadd.s32 %s164, 1
      %p168 = scmp.eq.s32.totalorder %s23, 7
      %p169 = scmp.ne.s32.totalorder %s164, %s166
      %p170 = scmp.eq.s32.totalorder %s23, 0
      %p171 = por %p169, %p170
      %p172 = scmp.ne.s32.totalorder %s164, %s166
      %p173 = scmp.eq.s32.totalorder %s28, 7
      %p174 = por %p172, %p173
      %p175 = scmp.ne.s32.totalorder %s166, %s167
      %p176 = scmp.eq.s32.totalorder %s28, 0
      %p177 = por %p175, %p176
      %p178 = scmp.ne.s32.totalorder %s166, %s167
      %p179 = scmp.eq.s32.totalorder %s29, 7
      %p180 = por %p178, %p179
      %p182 = scmp.ne.s32.totalorder %s167, %s181
      %p183 = scmp.eq.s32.totalorder %s29, 0
      %p184 = por %p182, %p183
      %s186 = sadd.s32 %s185, 1
      %p189 = scmp.eq.s32.totalorder %s23, 7
      %p190 = scmp.ne.s32.totalorder %s185, %s187
      %p191 = scmp.eq.s32.totalorder %s23, 0
      %p192 = por %p190, %p191
      %p193 = scmp.ne.s32.totalorder %s185, %s187
      %p194 = scmp.eq.s32.totalorder %s28, 7
      %p195 = por %p193, %p194
      %p196 = scmp.ne.s32.totalorder %s187, %s188
      %p197 = scmp.eq.s32.totalorder %s28, 0
      %p198 = por %p196, %p197
      %p199 = scmp.ne.s32.totalorder %s187, %s188
      %p200 = scmp.eq.s32.totalorder %s29, 7
      %p201 = por %p199, %p200
      %p203 = scmp.ne.s32.totalorder %s188, %s202
      %p204 = scmp.eq.s32.totalorder %s29, 0
      %p205 = por %p203, %p204
      %s207 = sadd.s32 %s206, 1
      %p210 = scmp.eq.s32.totalorder %s23, 7
      %p211 = scmp.ne.s32.totalorder %s206, %s208
      %p212 = scmp.eq.s32.totalorder %s23, 0
      %p213 = por %p211, %p212
      %p214 = scmp.ne.s32.totalorder %s206, %s208
      %p215 = scmp.eq.s32.totalorder %s28, 7
      %p216 = por %p214, %p215
      %p217 = scmp.ne.s32.totalorder %s208, %s209
      %p218 = scmp.eq.s32.totalorder %s28, 0
      %p219 = por %p217, %p218
      %p220 = scmp.ne.s32.totalorder %s208, %s209
      %p221 = scmp.eq.s32.totalorder %s29, 7
      %p222 = por %p220, %p221
      %p224 = scmp.ne.s32.totalorder %s209, %s223
      %p225 = scmp.eq.s32.totalorder %s29, 0
      %p226 = por %p224, %p225
      %s228 = sadd.s32 %s227, 1
      %p231 = scmp.eq.s32.totalorder %s23, 7
      %p232 = scmp.ne.s32.totalorder %s227, %s229
      %p233 = scmp.eq.s32.totalorder %s23, 0
      %p234 = por %p232, %p233
      %p235 = scmp.ne.s32.totalorder %s227, %s229
      %p236 = scmp.eq.s32.totalorder %s28, 7
      %p237 = por %p235, %p236
      %p238 = scmp.ne.s32.totalorder %s229, %s230
      %p239 = scmp.eq.s32.totalorder %s28, 0
      %p240 = por %p238, %p239
      %p241 = scmp.ne.s32.totalorder %s229, %s230
      %p242 = scmp.eq.s32.totalorder %s29, 7
      %p243 = por %p241, %p242
      %p245 = scmp.ne.s32.totalorder %s230, %s244
      %p246 = scmp.eq.s32.totalorder %s29, 0
      %p247 = por %p245, %p246
      %s249 = sadd.s32 %s248, 1
      %p252 = scmp.eq.s32.totalorder %s23, 7
      %p253 = scmp.ne.s32.totalorder %s248, %s250
      %p254 = scmp.eq.s32.totalorder %s23, 0
      %p255 = por %p253, %p254
      %p256 = scmp.ne.s32.totalorder %s248, %s250
      %p257 = scmp.eq.s32.totalorder %s28, 7
      %p258 = por %p256, %p257
      %p259 = scmp.ne.s32.totalorder %s250, %s251
      %p260 = scmp.eq.s32.totalorder %s28, 0
      %p261 = por %p259, %p260
      %p262 = scmp.ne.s32.totalorder %s250, %s251
      %p263 = scmp.eq.s32.totalorder %s29, 7
      %p264 = por %p262, %p263
      %p266 = scmp.ne.s32.totalorder %s251, %s265
      %p267 = scmp.eq.s32.totalorder %s29, 0
      %p268 = por %p266, %p267
      %s269 = ssub.s32 %s30, %s49
      %s270 = ssub.s32 %s31, %s45
      %s271 = sor.u32 %s269, %s270
      %p272 = scmp.eq.s32.totalorder %s271, 0
      %s274 = sadd.s32 %s273, 1
      %s275 = scalar_select %p272, %s273, %s274
      %p278 = pneg %p272
      %p279 = scmp.eq.s32.totalorder %s23, 7
      %p280 = por %p278, %p279
      %p281 = scmp.ne.s32.totalorder %s273, %s276
      %p282 = scmp.eq.s32.totalorder %s23, 0
      %p283 = por %p281, %p282
      %p284 = scmp.ne.s32.totalorder %s273, %s276
      %p285 = scmp.eq.s32.totalorder %s28, 7
      %p286 = por %p284, %p285
      %p287 = scmp.ne.s32.totalorder %s276, %s277
      %p288 = scmp.eq.s32.totalorder %s28, 0
      %p289 = por %p287, %p288
      %p290 = scmp.ne.s32.totalorder %s276, %s277
      %p291 = scmp.eq.s32.totalorder %s29, 7
      %p292 = por %p290, %p291
      %p294 = scmp.ne.s32.totalorder %s277, %s293
      %p295 = scmp.eq.s32.totalorder %s29, 0
      %p296 = por %p294, %p295
      %s297 = ssub.s32 %s30, %s49
      %s298 = ssub.s32 %s31, %s45
      %s299 = sor.u32 %s297, %s298
      %s300 = ssub.s32 %s32, %s41
      %s301 = sor.u32 %s299, %s300
      %p302 = scmp.eq.s32.totalorder %s301, 0
      %s304 = sadd.s32 %s303, 1
      %s305 = scalar_select %p302, %s303, %s304
      %p308 = pneg %p302
      %p309 = scmp.eq.s32.totalorder %s23, 7
      %p310 = por %p308, %p309
      %p311 = scmp.ne.s32.totalorder %s303, %s306
      %p312 = scmp.eq.s32.totalorder %s23, 0
      %p313 = por %p311, %p312
      %p314 = scmp.ne.s32.totalorder %s303, %s306
      %p315 = scmp.eq.s32.totalorder %s28, 7
      %p316 = por %p314, %p315
      %p317 = scmp.ne.s32.totalorder %s306, %s307
      %p318 = scmp.eq.s32.totalorder %s28, 0
      %p319 = por %p317, %p318
      %p320 = scmp.ne.s32.totalorder %s306, %s307
      %p321 = scmp.eq.s32.totalorder %s29, 7
      %p322 = por %p320, %p321
      %p324 = scmp.ne.s32.totalorder %s307, %s323
      %p325 = scmp.eq.s32.totalorder %s29, 0
      %p326 = por %p324, %p325
      %p327 = scmp.le.s32.totalorder 1, %s23
      %p328 = scmp.lt.s32.totalorder %s23, 9
      %p329 = pnand %p327, %p328
      %p330 = pneg %p329
      // Predicated region
      $region9: #{_edge_gnn_call.1} parent=5 // pred_check
        _
      $region10: #{_edge_gnn_call.1} parent=5 // pred_check_branch
        %332 = sbr.rel (%p329) target = $region12
      $region11: #{_edge_gnn_call.1} parent=5 // pred_region
        %s333 = ssub.s32 %s23, 1
        // Predicated region
        $region13: #{_edge_gnn_call.1} parent=11 // pred_check
          %p334 = pneg %p177
        $region14: #{_edge_gnn_call.1} parent=11 // pred_check_branch
          %336 = sbr.rel (%p334) target = $region16
        $region15: #{_edge_gnn_call.1} parent=11 // pred_region
          _
        $region16: #{_edge_gnn_call.1} parent=11 // pred_fallthru
          _
        // Predicated region
        $region17: #{_edge_gnn_call.1} parent=11 // pred_check
          %p337 = pneg %p198
        $region18: #{_edge_gnn_call.1} parent=11 // pred_check_branch
          %339 = sbr.rel (%p337) target = $region20
        $region19: #{_edge_gnn_call.1} parent=11 // pred_region
          _
        $region20: #{_edge_gnn_call.1} parent=11 // pred_fallthru
          _
        // Predicated region
        $region21: #{_edge_gnn_call.1} parent=11 // pred_check
          %p340 = pneg %p219
        $region22: #{_edge_gnn_call.1} parent=11 // pred_check_branch
          %342 = sbr.rel (%p340) target = $region24
        $region23: #{_edge_gnn_call.1} parent=11 // pred_region
          _
        $region24: #{_edge_gnn_call.1} parent=11 // pred_fallthru
          _
        // Predicated region
        $region25: #{_edge_gnn_call.1} parent=11 // pred_check
          %p343 = pneg %p240
        $region26: #{_edge_gnn_call.1} parent=11 // pred_check_branch
          %345 = sbr.rel (%p343) target = $region28
        $region27: #{_edge_gnn_call.1} parent=11 // pred_region
          _
        $region28: #{_edge_gnn_call.1} parent=11 // pred_fallthru
          _
        // Predicated region
        $region29: #{_edge_gnn_call.1} parent=11 // pred_check
          %p346 = pneg %p261
        $region30: #{_edge_gnn_call.1} parent=11 // pred_check_branch
          %348 = sbr.rel (%p346) target = $region32
        $region31: #{_edge_gnn_call.1} parent=11 // pred_region
          _
        $region32: #{_edge_gnn_call.1} parent=11 // pred_fallthru
          _
      $region12: #{_edge_gnn_call.1} parent=5 // pred_fallthru
        _
      %p349 = scmp.lt.s32.totalorder %s23, 8
      // Predicated region
      $region33: #{_edge_gnn_call.1} parent=5 // pred_check
        %p350 = pneg %p349
      $region34: #{_edge_gnn_call.1} parent=5 // pred_check_branch
        %352 = sbr.rel (%p350) target = $region36
      $region35: #{_edge_gnn_call.1} parent=5 // pred_region
        // Predicated region
        $region37: #{_edge_gnn_call.1} parent=35 // pred_check
          %p353 = pneg %p64
        $region38: #{_edge_gnn_call.1} parent=35 // pred_check_branch
          %355 = sbr.rel (%p353) target = $region40
        $region39: #{_edge_gnn_call.1} parent=35 // pred_region
          %p356 = scmp.lt.s32.totalorder %s30, 1
          %s357 = scalar_select %p356, %s30, 1
          %p358 = scmp.lt.s32.totalorder %s32, 1
          %s359 = scalar_select %p358, %s32, 1
          %s360 = smul.addr %s359, 2
          %s361 = smul.addr %s357, 4
          %s362 = sadd.s32 %s360, %s361
          %s363 = smul.addr %s362, 8
          %s364 = scalar_lea.vmem %s0, %s363
        $region40: #{_edge_gnn_call.1} parent=35 // pred_fallthru
          _
        // Predicated region
        $region41: #{_edge_gnn_call.1} parent=35 // pred_check
          %p365 = pneg %p92
        $region42: #{_edge_gnn_call.1} parent=35 // pred_check_branch
          %367 = sbr.rel (%p365) target = $region44
        $region43: #{_edge_gnn_call.1} parent=35 // pred_region
          %p368 = scmp.lt.s32.totalorder %s30, 1
          %s369 = scalar_select %p368, %s30, 1
          %p370 = scmp.lt.s32.totalorder %s31, 1
          %s371 = scalar_select %p370, %s31, 1
          %s372 = smul.addr %s369, 2
          %s373 = sadd.s32 %s371, %s372
          %s374 = smul.addr %s373, 8
          %s375 = scalar_lea.vmem %s1, %s374
        $region44: #{_edge_gnn_call.1} parent=35 // pred_fallthru
          _
        // Predicated region
        $region45: #{_edge_gnn_call.1} parent=35 // pred_check
          %p376 = pneg %p120
        $region46: #{_edge_gnn_call.1} parent=35 // pred_check_branch
          %378 = sbr.rel (%p376) target = $region48
        $region47: #{_edge_gnn_call.1} parent=35 // pred_region
          %p379 = scmp.lt.s32.totalorder %s30, 1
          %s380 = scalar_select %p379, %s30, 1
          %p381 = scmp.lt.s32.totalorder %s31, 1
          %s382 = scalar_select %p381, %s31, 1
          %s383 = smul.addr %s380, 2
          %s384 = sadd.s32 %s382, %s383
          %s385 = smul.addr %s384, 8
          %s386 = scalar_lea.vmem %s2, %s385
        $region48: #{_edge_gnn_call.1} parent=35 // pred_fallthru
          _
        // Predicated region
        $region49: #{_edge_gnn_call.1} parent=35 // pred_check
          %p387 = pneg %p150
        $region50: #{_edge_gnn_call.1} parent=35 // pred_check_branch
          %389 = sbr.rel (%p387) target = $region52
        $region51: #{_edge_gnn_call.1} parent=35 // pred_region
          %s390 = sand.u32 %s140, 1
          %s391 = sand.u32 %s140, 1
          %s392 = smul.addr %s391, 64
          %s393 = scalar_lea.vmem [#allocation3], %s392
          %s394 = smul.u32 8, %s31
          %s395 = smul.addr %s394, 2
          %s396 = sadd.s32 %s32, %s395
          %s397 = smul.addr %s30, 32
          %s398 = sadd.s32 %s396, %s397
          %s399 = smul.addr %s398, 8
          %s400 = scalar_lea.vmem %s3, %s399
          // Predicated region
          $region53: #{_edge_gnn_call.1} parent=51 // pred_check
            _
          $region54: #{_edge_gnn_call.1} parent=51 // pred_check_branch
            %402 = sbr.rel (0) target = $region56
          $region55: #{_edge_gnn_call.1} parent=51 // pred_region
            // Predicated region
            $region57: #{_edge_gnn_call.1} parent=55 // pred_check
              _
            $region58: #{_edge_gnn_call.1} parent=55 // pred_check_branch
              %404 = sbr.rel (0) target = $region60
            $region59: #{_edge_gnn_call.1} parent=55 // pred_region
              // Predicated region
              $region72: #{_edge_gnn_call.1} parent=59 // pred_check
                _
              $region73: #{_edge_gnn_call.1} parent=59 // pred_check_branch
                %434 = sbr.rel (0) target = $region75
              $region74: #{_edge_gnn_call.1} parent=59 // pred_region
                loop: start=0, step=1, limit=1
                $region76: #{_edge_gnn_call.1} parent=74 // loop_pre_header
                  _
                $region77: #{_edge_gnn_call.1} parent=74 // loop_header
                  %s436 = sphi 0, %s440
                  %p437 = scmp.ge.s32.totalorder %s436, 1
                  %s441 = sphi %s400, %s400
                  %s442 = sphi %s393, %s393
                $region78: #{_edge_gnn_call.1} parent=74 // loop_header_branch
                  %439 = sbr.rel (%p437) target = $region82
                $region79: #{_edge_gnn_call.1} parent=74 // loop_body
                  %v443 = vld [vmem:[%s441] sm:$0xff]
                  %444 = vst [vmem:[%s442] sm:$0xff] %v443
                  %v445 = vld [vmem:[%s441 + $0x10] sm:$0xff]
                  %446 = vst [vmem:[%s442 + $0x8] sm:$0xff] %v445
                  %v447 = vld [vmem:[%s441 + $0x20] sm:$0xff]
                  %448 = vst [vmem:[%s442 + $0x10] sm:$0xff] %v447
                  %v449 = vld [vmem:[%s441 + $0x30] sm:$0xff]
                  %450 = vst [vmem:[%s442 + $0x18] sm:$0xff] %v449
                  %v451 = vld [vmem:[%s441 + $0x40] sm:$0xff]
                  %452 = vst [vmem:[%s442 + $0x20] sm:$0xff] %v451
                  %v453 = vld [vmem:[%s441 + $0x50] sm:$0xff]
                  %454 = vst [vmem:[%s442 + $0x28] sm:$0xff] %v453
                  %v455 = vld [vmem:[%s441 + $0x60] sm:$0xff]
                  %456 = vst [vmem:[%s442 + $0x30] sm:$0xff] %v455
                  %v457 = vld [vmem:[%s441 + $0x70] sm:$0xff]
                  %458 = vst [vmem:[%s442 + $0x38] sm:$0xff] %v457
                $region80: #{_edge_gnn_call.1} parent=74 // loop_footer
                  %s440 = sadd.s32 1, %s436
                $region81: #{_edge_gnn_call.1} parent=74 // loop_footer_branch
                  %435 = sbr.rel target = $region77
                $region82: #{_edge_gnn_call.1} parent=74 // loop_exit
                  _
              $region75: #{_edge_gnn_call.1} parent=59 // pred_fallthru
                _
              // Predicated region
              $region83: #{_edge_gnn_call.1} parent=59 // pred_check
                _
              $region84: #{_edge_gnn_call.1} parent=59 // pred_check_branch
                %460 = sbr.rel target = $region86
              $region85: #{_edge_gnn_call.1} parent=59 // pred_region
                _
              $region86: #{_edge_gnn_call.1} parent=59 // pred_fallthru
                _
            $region60: #{_edge_gnn_call.1} parent=55 // pred_fallthru
              _
            // Predicated region
            $region61: #{_edge_gnn_call.1} parent=55 // pred_check
              _
            $region62: #{_edge_gnn_call.1} parent=55 // pred_check_branch
              %406 = sbr.rel target = $region64
            $region63: #{_edge_gnn_call.1} parent=55 // pred_region
              %s408 = ssub.s32 256, 1
              loop: start=0, step=1, limit=1
              $region65: #{_edge_gnn_call.1} parent=63 // loop_pre_header
                _
              $region66: #{_edge_gnn_call.1} parent=63 // loop_header
                %s410 = sphi 0, %s414
                %p411 = scmp.ge.s32.totalorder %s410, 1
                %s415 = sphi %s400, %s400
                %s416 = sphi %s393, %s393
              $region67: #{_edge_gnn_call.1} parent=63 // loop_header_branch
                %413 = sbr.rel (%p411) target = $region71
              $region68: #{_edge_gnn_call.1} parent=63 // loop_body
                %v417 = vld [vmem:[%s415] sm:%s408]
                %418 = vst [vmem:[%s416] sm:%s408] %v417
                %v419 = vld [vmem:[%s415 + $0x10] sm:%s408]
                %420 = vst [vmem:[%s416 + $0x8] sm:%s408] %v419
                %v421 = vld [vmem:[%s415 + $0x20] sm:%s408]
                %422 = vst [vmem:[%s416 + $0x10] sm:%s408] %v421
                %v423 = vld [vmem:[%s415 + $0x30] sm:%s408]
                %424 = vst [vmem:[%s416 + $0x18] sm:%s408] %v423
                %v425 = vld [vmem:[%s415 + $0x40] sm:%s408]
                %426 = vst [vmem:[%s416 + $0x20] sm:%s408] %v425
                %v427 = vld [vmem:[%s415 + $0x50] sm:%s408]
                %428 = vst [vmem:[%s416 + $0x28] sm:%s408] %v427
                %v429 = vld [vmem:[%s415 + $0x60] sm:%s408]
                %430 = vst [vmem:[%s416 + $0x30] sm:%s408] %v429
                %v431 = vld [vmem:[%s415 + $0x70] sm:%s408]
                %432 = vst [vmem:[%s416 + $0x38] sm:%s408] %v431
              $region69: #{_edge_gnn_call.1} parent=63 // loop_footer
                %s414 = sadd.s32 1, %s410
              $region70: #{_edge_gnn_call.1} parent=63 // loop_footer_branch
                %409 = sbr.rel target = $region66
              $region71: #{_edge_gnn_call.1} parent=63 // loop_exit
                _
            $region64: #{_edge_gnn_call.1} parent=55 // pred_fallthru
              _
          $region56: #{_edge_gnn_call.1} parent=51 // pred_fallthru
            _
          %461 = vnop
        $region52: #{_edge_gnn_call.1} parent=35 // pred_fallthru
          _
      $region36: #{_edge_gnn_call.1} parent=5 // pred_fallthru
        _
      %p462 = scmp.le.s32.totalorder 1, %s23
      %p463 = scmp.lt.s32.totalorder %s23, 9
      %p464 = pnand %p462, %p463
      %p465 = pneg %p464
      // Predicated region
      $region87: #{_edge_gnn_call.1} parent=5 // pred_check
        _
      $region88: #{_edge_gnn_call.1} parent=5 // pred_check_branch
        %467 = sbr.rel (%p464) target = $region90
      $region89: #{_edge_gnn_call.1} parent=5 // pred_region
        %s468 = ssub.s32 %s23, 1
        %s469 = sand.u32 %s143, 1
        %s470 = sand.u32 %s143, 1
        %s471 = smul.addr %s470, 64
        %s472 = scalar_lea.vmem [#allocation3], %s471
        // Predicated region
        $region91: #{_edge_gnn_call.1} parent=89 // pred_check
          %p473 = pneg %p156
        $region92: #{_edge_gnn_call.1} parent=89 // pred_check_branch
          %475 = sbr.rel (%p473) target = $region94
        $region93: #{_edge_gnn_call.1} parent=89 // pred_region
          _
        $region94: #{_edge_gnn_call.1} parent=89 // pred_fallthru
          _
        %p476 = scmp.lt.s32.totalorder %s33, 1
        %s477 = scalar_select %p476, %s33, 1
        %p478 = scmp.lt.s32.totalorder %s35, 1
        %s479 = scalar_select %p478, %s35, 1
        %s480 = smul.addr %s479, 2
        %s481 = smul.addr %s477, 4
        %s482 = sadd.s32 %s480, %s481
        %s483 = smul.addr %s482, 8
        %s484 = scalar_lea.vmem %s0, %s483
        %p485 = pneg %p70
        %p486 = pneg %p67
        %p487 = scmp.lt.s32.totalorder %s33, 1
        %s488 = scalar_select %p487, %s33, 1
        %p489 = scmp.lt.s32.totalorder %s34, 1
        %s490 = scalar_select %p489, %s34, 1
        %s491 = smul.addr %s488, 2
        %s492 = sadd.s32 %s490, %s491
        %s493 = smul.addr %s492, 8
        %s494 = scalar_lea.vmem %s1, %s493
        %p495 = pneg %p98
        %p496 = pneg %p95
        %p497 = scmp.lt.s32.totalorder %s33, 1
        %s498 = scalar_select %p497, %s33, 1
        %p499 = scmp.lt.s32.totalorder %s34, 1
        %s500 = scalar_select %p499, %s34, 1
        %s501 = smul.addr %s498, 2
        %s502 = sadd.s32 %s500, %s501
        %s503 = smul.addr %s502, 8
        %s504 = scalar_lea.vmem %s2, %s503
        %p505 = pneg %p126
        %p506 = pneg %p123
        %s507 = sand.u32 %s143, 1
        %s508 = sand.u32 %s143, 1
        %s509 = smul.addr %s508, 64
        %s510 = scalar_lea.vmem [#allocation3], %s509
        %p511 = pneg %p156
        %p512 = pneg %p153
        %p513 = pneg %p177
        %p514 = pneg %p174
        %p515 = pneg %p198
        %p516 = pneg %p195
        %p517 = pneg %p219
        %p518 = pneg %p216
        %p519 = pneg %p240
        %p520 = pneg %p237
        %p521 = pneg %p261
        %p522 = pneg %p258
        %p523 = pneg %p289
        %p524 = pneg %p286
        %s525 = sand.u32 %s276, 1
        %s526 = scalar_lea.sflag [#allocation5], %s525
        %s527 = sand.u32 %s276, 1
        %s528 = smul.addr %s527, 8
        %s529 = scalar_lea.vmem [#allocation4], %s528
        %p530 = pneg %p319
        %p531 = pneg %p316
        %s532 = sand.u32 %s306, 1
        %s533 = scalar_lea.sflag [#allocation7], %s532
        %s534 = sand.u32 %s306, 1
        %s535 = smul.addr %s534, 64
        %s536 = scalar_lea.vmem [#allocation6], %s535
        %p537 = scmp.lt.s32.totalorder %s33, 1
        %s538 = scalar_select %p537, %s33, 1
        %p539 = scmp.lt.s32.totalorder %s35, 1
        %s540 = scalar_select %p539, %s35, 1
        %s541 = smul.addr %s540, 2
        %s542 = smul.addr %s538, 4
        %s543 = sadd.s32 %s541, %s542
        %s544 = smul.addr %s543, 8
        %s545 = scalar_lea.vmem %s0, %s544
        %p546 = scmp.lt.s32.totalorder %s33, 1
        %s547 = scalar_select %p546, %s33, 1
        %p548 = scmp.lt.s32.totalorder %s34, 1
        %s549 = scalar_select %p548, %s34, 1
        %s550 = smul.addr %s547, 2
        %s551 = sadd.s32 %s549, %s550
        %s552 = smul.addr %s551, 8
        %s553 = scalar_lea.vmem %s1, %s552
        %p554 = scmp.lt.s32.totalorder %s33, 1
        %s555 = scalar_select %p554, %s33, 1
        %p556 = scmp.lt.s32.totalorder %s34, 1
        %s557 = scalar_select %p556, %s34, 1
        %s558 = smul.addr %s555, 2
        %s559 = sadd.s32 %s557, %s558
        %s560 = smul.addr %s559, 8
        %s561 = scalar_lea.vmem %s2, %s560
        %s562 = smul.u32 8, %s34
        %s563 = smul.u32 8, %s34
        %v564 = vld [vmem:[%s545] sm:$0xff]
        %v565 = vld [vmem:[%s545 + $0x8] sm:$0xff]
        %v566 = vld [vmem:[%s553] sm:$0xff]
        %v567 = vld [vmem:[%s472] sm:$0xff]
        %v568 = vld [vmem:[%s472 + $0x8] sm:$0xff]
        %v569 = vld [vmem:[%s472 + $0x10] sm:$0xff]
        %v570 = vld [vmem:[%s472 + $0x18] sm:$0xff]
        %v571 = vld [vmem:[%s472 + $0x20] sm:$0xff]
        %v572 = vld [vmem:[%s472 + $0x28] sm:$0xff]
        %v573 = vld [vmem:[%s472 + $0x30] sm:$0xff]
        %v574 = vld [vmem:[%s472 + $0x38] sm:$0xff]
        %v575 = vld [vmem:[%s4] sm:$0xff]
        %v576 = vld [vmem:[%s4 + $0x8] sm:$0xff]
        %v577 = vld [vmem:[%s4 + $0x10] sm:$0xff]
        %v578 = vld [vmem:[%s4 + $0x18] sm:$0xff]
        %v579 = vld [vmem:[%s4 + $0x20] sm:$0xff]
        %v580 = vld [vmem:[%s4 + $0x28] sm:$0xff]
        %v581 = vld [vmem:[%s4 + $0x30] sm:$0xff]
        %v582 = vld [vmem:[%s4 + $0x38] sm:$0xff]
        %v583 = vld [vmem:[%s4 + $0x40] sm:$0xff]
        %v584 = vld [vmem:[%s4 + $0x48] sm:$0xff]
        %v585 = vld [vmem:[%s4 + $0x50] sm:$0xff]
        %v586 = vld [vmem:[%s4 + $0x58] sm:$0xff]
        %v587 = vld [vmem:[%s4 + $0x60] sm:$0xff]
        %v588 = vld [vmem:[%s4 + $0x68] sm:$0xff]
        %v589 = vld [vmem:[%s4 + $0x70] sm:$0xff]
        %v590 = vld [vmem:[%s4 + $0x78] sm:$0xff]
        %591 = vmatpush.msra.mxu0 %v590
        %592 = vmatpush.msra.mxu0 %v589
        %593 = vmatpush.msra.mxu0 %v588
        %594 = vmatpush.msra.mxu0 %v587
        %595 = vmatpush.msra.mxu0 %v586
        %596 = vmatpush.msra.mxu0 %v585
        %597 = vmatpush.msra.mxu0 %v584
        %598 = vmatpush.msra.mxu0 %v583
        %599 = vmatpush.msra.mxu0 %v582
        %600 = vmatpush.msra.mxu0 %v581
        %601 = vmatpush.msra.mxu0 %v580
        %602 = vmatpush.msra.mxu0 %v579
        %603 = vmatpush.msra.mxu0 %v578
        %604 = vmatpush.msra.mxu0 %v577
        %605 = vmatpush.msra.mxu0 %v576
        %606 = vmatpush.msra.mxu0 %v575
        %607 = vmatmul.f32.gmra.mxu0 %v567
        %v608 = vpop.f32.mrf.mxu0
        %v609 = vadd.f32 0.0, %v608
        %610 = vmatmul.f32.gmra.mxu0 %v568
        %v611 = vpop.f32.mrf.mxu0
        %v612 = vadd.f32 0.0, %v611
        %613 = vmatmul.f32.gmra.mxu0 %v569
        %v614 = vpop.f32.mrf.mxu0
        %v615 = vadd.f32 0.0, %v614
        %616 = vmatmul.f32.gmra.mxu0 %v570
        %v617 = vpop.f32.mrf.mxu0
        %v618 = vadd.f32 0.0, %v617
        %619 = vmatmul.f32.gmra.mxu0 %v571
        %v620 = vpop.f32.mrf.mxu0
        %v621 = vadd.f32 0.0, %v620
        %622 = vmatmul.f32.gmra.mxu0 %v572
        %v623 = vpop.f32.mrf.mxu0
        %v624 = vadd.f32 0.0, %v623
        %625 = vmatmul.f32.gmra.mxu0 %v573
        %v626 = vpop.f32.mrf.mxu0
        %v627 = vadd.f32 0.0, %v626
        %628 = vmatmul.f32.gmra.mxu0 %v574
        %v629 = vpop.f32.mrf.mxu0
        %v630 = vadd.f32 0.0, %v629
        %631 = vdwg.mxu0
        %v633 = vrot.slane %v566, 1
        %v634 = vrot.slane %v566, 2
        %v635 = vrot.slane %v566, 3
        %v636 = vrot.slane %v566, 4
        %v637 = vrot.slane %v566, 5
        %v638 = vrot.slane %v566, 6
        %v639 = vrot.slane %v566, 7
        %v640 = vperm.slane %v566, 0
        %v641 = vperm.slane %v633, 0
        %v642 = vperm.slane %v634, 0
        %v643 = vperm.slane %v635, 0
        %v644 = vperm.slane %v636, 0
        %v645 = vperm.slane %v637, 0
        %v646 = vperm.slane %v638, 0
        %v647 = vperm.slane %v639, 0
        %v656 = vadd.f32 %v565, %v640
        %v657 = vadd.f32 %v565, %v641
        %v658 = vadd.f32 %v565, %v642
        %v659 = vadd.f32 %v565, %v643
        %v660 = vadd.f32 %v565, %v644
        %v661 = vadd.f32 %v565, %v645
        %v662 = vadd.f32 %v565, %v646
        %v663 = vadd.f32 %v565, %v647
        %v664 = vadd.f32 %v656, %v609
        %v665 = vadd.f32 %v657, %v612
        %v666 = vadd.f32 %v658, %v615
        %v667 = vadd.f32 %v659, %v618
        %v668 = vadd.f32 %v660, %v621
        %v669 = vadd.f32 %v661, %v624
        %v670 = vadd.f32 %v662, %v627
        %v671 = vadd.f32 %v663, %v630
        %v672 = vxor.u32 %v664, 2147483648
        %v673 = vxor.u32 %v665, 2147483648
        %v674 = vxor.u32 %v666, 2147483648
        %v675 = vxor.u32 %v667, 2147483648
        %v676 = vxor.u32 %v668, 2147483648
        %v677 = vxor.u32 %v669, 2147483648
        %v678 = vxor.u32 %v670, 2147483648
        %v679 = vxor.u32 %v671, 2147483648
        %v680 = vmul.f32 %v672, 1.442695
        %v681 = vpow.pop %v680
        %v682 = vmul.f32 %v673, 1.442695
        %v683 = vpow.pop %v682
        %v684 = vmul.f32 %v674, 1.442695
        %v685 = vpow.pop %v684
        %v686 = vmul.f32 %v675, 1.442695
        %v687 = vpow.pop %v686
        %v688 = vmul.f32 %v676, 1.442695
        %v689 = vpow.pop %v688
        %v690 = vmul.f32 %v677, 1.442695
        %v691 = vpow.pop %v690
        %v692 = vmul.f32 %v678, 1.442695
        %v693 = vpow.pop %v692
        %v694 = vmul.f32 %v679, 1.442695
        %v695 = vpow.pop %v694
        %v696 = vadd.f32 %v681, 1.0
        %v697 = vadd.f32 %v683, 1.0
        %v698 = vadd.f32 %v685, 1.0
        %v699 = vadd.f32 %v687, 1.0
        %v700 = vadd.f32 %v689, 1.0
        %v701 = vadd.f32 %v691, 1.0
        %v702 = vadd.f32 %v693, 1.0
        %v703 = vadd.f32 %v695, 1.0
        %v704 = vrcp.pop %v696
        %v705 = vmul.f32 %v696, %v704
        %v706 = vsub.f32 1.0, %v705
        %v707 = vmul.f32 %v704, %v706
        %v708 = vadd.f32 %v704, %v707
        %vm709 = vweird.f32 %v696
        %vm710 = vweird.f32 %v704
        %vm711 = vmor %vm709, %vm710
        %v712 = vsel %vm711, %v704, %v708
        %v713 = vand.u32 2147483647, %v696
        %vm714 = vcmp.eq.f32.partialorder %v713, 8.507059e+37
        %v715 = vand.u32 %v696, 2147483648
        %v716 = vor.u32 1.1754944e-38, %v715
        %v717 = vsel %vm714, %v716, %v712
        %v718 = vmul.f32 1.0, %v717
        %v719 = vrcp.pop %v697
        %v720 = vmul.f32 %v697, %v719
        %v721 = vsub.f32 1.0, %v720
        %v722 = vmul.f32 %v719, %v721
        %v723 = vadd.f32 %v719, %v722
        %vm724 = vweird.f32 %v697
        %vm725 = vweird.f32 %v719
        %vm726 = vmor %vm724, %vm725
        %v727 = vsel %vm726, %v719, %v723
        %v728 = vand.u32 2147483647, %v697
        %vm729 = vcmp.eq.f32.partialorder %v728, 8.507059e+37
        %v730 = vand.u32 %v697, 2147483648
        %v731 = vor.u32 1.1754944e-38, %v730
        %v732 = vsel %vm729, %v731, %v727
        %v733 = vmul.f32 1.0, %v732
        %v734 = vrcp.pop %v698
        %v735 = vmul.f32 %v698, %v734
        %v736 = vsub.f32 1.0, %v735
        %v737 = vmul.f32 %v734, %v736
        %v738 = vadd.f32 %v734, %v737
        %vm739 = vweird.f32 %v698
        %vm740 = vweird.f32 %v734
        %vm741 = vmor %vm739, %vm740
        %v742 = vsel %vm741, %v734, %v738
        %v743 = vand.u32 2147483647, %v698
        %vm744 = vcmp.eq.f32.partialorder %v743, 8.507059e+37
        %v745 = vand.u32 %v698, 2147483648
        %v746 = vor.u32 1.1754944e-38, %v745
        %v747 = vsel %vm744, %v746, %v742
        %v748 = vmul.f32 1.0, %v747
        %v749 = vrcp.pop %v699
        %v750 = vmul.f32 %v699, %v749
        %v751 = vsub.f32 1.0, %v750
        %v752 = vmul.f32 %v749, %v751
        %v753 = vadd.f32 %v749, %v752
        %vm754 = vweird.f32 %v699
        %vm755 = vweird.f32 %v749
        %vm756 = vmor %vm754, %vm755
        %v757 = vsel %vm756, %v749, %v753
        %v758 = vand.u32 2147483647, %v699
        %vm759 = vcmp.eq.f32.partialorder %v758, 8.507059e+37
        %v760 = vand.u32 %v699, 2147483648
        %v761 = vor.u32 1.1754944e-38, %v760
        %v762 = vsel %vm759, %v761, %v757
        %v763 = vmul.f32 1.0, %v762
        %v764 = vrcp.pop %v700
        %v765 = vmul.f32 %v700, %v764
        %v766 = vsub.f32 1.0, %v765
        %v767 = vmul.f32 %v764, %v766
        %v768 = vadd.f32 %v764, %v767
        %vm769 = vweird.f32 %v700
        %vm770 = vweird.f32 %v764
        %vm771 = vmor %vm769, %vm770
        %v772 = vsel %vm771, %v764, %v768
        %v773 = vand.u32 2147483647, %v700
        %vm774 = vcmp.eq.f32.partialorder %v773, 8.507059e+37
        %v775 = vand.u32 %v700, 2147483648
        %v776 = vor.u32 1.1754944e-38, %v775
        %v777 = vsel %vm774, %v776, %v772
        %v778 = vmul.f32 1.0, %v777
        %v779 = vrcp.pop %v701
        %v780 = vmul.f32 %v701, %v779
        %v781 = vsub.f32 1.0, %v780
        %v782 = vmul.f32 %v779, %v781
        %v783 = vadd.f32 %v779, %v782
        %vm784 = vweird.f32 %v701
        %vm785 = vweird.f32 %v779
        %vm786 = vmor %vm784, %vm785
        %v787 = vsel %vm786, %v779, %v783
        %v788 = vand.u32 2147483647, %v701
        %vm789 = vcmp.eq.f32.partialorder %v788, 8.507059e+37
        %v790 = vand.u32 %v701, 2147483648
        %v791 = vor.u32 1.1754944e-38, %v790
        %v792 = vsel %vm789, %v791, %v787
        %v793 = vmul.f32 1.0, %v792
        %v794 = vrcp.pop %v702
        %v795 = vmul.f32 %v702, %v794
        %v796 = vsub.f32 1.0, %v795
        %v797 = vmul.f32 %v794, %v796
        %v798 = vadd.f32 %v794, %v797
        %vm799 = vweird.f32 %v702
        %vm800 = vweird.f32 %v794
        %vm801 = vmor %vm799, %vm800
        %v802 = vsel %vm801, %v794, %v798
        %v803 = vand.u32 2147483647, %v702
        %vm804 = vcmp.eq.f32.partialorder %v803, 8.507059e+37
        %v805 = vand.u32 %v702, 2147483648
        %v806 = vor.u32 1.1754944e-38, %v805
        %v807 = vsel %vm804, %v806, %v802
        %v808 = vmul.f32 1.0, %v807
        %v809 = vrcp.pop %v703
        %v810 = vmul.f32 %v703, %v809
        %v811 = vsub.f32 1.0, %v810
        %v812 = vmul.f32 %v809, %v811
        %v813 = vadd.f32 %v809, %v812
        %vm814 = vweird.f32 %v703
        %vm815 = vweird.f32 %v809
        %vm816 = vmor %vm814, %vm815
        %v817 = vsel %vm816, %v809, %v813
        %v818 = vand.u32 2147483647, %v703
        %vm819 = vcmp.eq.f32.partialorder %v818, 8.507059e+37
        %v820 = vand.u32 %v703, 2147483648
        %v821 = vor.u32 1.1754944e-38, %v820
        %v822 = vsel %vm819, %v821, %v817
        %v823 = vmul.f32 1.0, %v822
        %p824 = scmp.eq.s32.totalorder %s35, 0
        // Predicated region
        $region95: #{_edge_gnn_call.1} parent=89 // pred_check
          %p825 = pneg %p824
        $region96: #{_edge_gnn_call.1} parent=89 // pred_check_branch
          %827 = sbr.rel (%p825) target = $region98
        $region97: #{_edge_gnn_call.1} parent=89 // pred_region
          %828 = vst [vmem:[#allocation2] sm:$0xff] 0.0
        $region98: #{_edge_gnn_call.1} parent=89 // pred_fallthru
          _
        %v829 = vld [vmem:[#allocation2] sm:$0xff]
        %v830 = vmul.f32 %v718, %v564
        %v831 = vmul.f32 %v733, %v564
        %v832 = vmul.f32 %v748, %v564
        %v833 = vmul.f32 %v763, %v564
        %v834 = vmul.f32 %v778, %v564
        %v835 = vmul.f32 %v793, %v564
        %v836 = vmul.f32 %v808, %v564
        %v837 = vmul.f32 %v823, %v564
        %v838 = vrot.slane %v830, 4
        %v839 = vadd.f32 %v830, %v838
        %v840 = vrot.slane %v839, 2
        %v841 = vadd.f32 %v839, %v840
        %v842 = vrot.slane %v841, 1
        %v843 = vadd.f32 %v841, %v842
        %v844 = vrot.slane %v831, 4
        %v845 = vadd.f32 %v831, %v844
        %v846 = vrot.slane %v845, 2
        %v847 = vadd.f32 %v845, %v846
        %v848 = vrot.slane %v847, 1
        %v849 = vadd.f32 %v847, %v848
        %v850 = vrot.slane %v832, 4
        %v851 = vadd.f32 %v832, %v850
        %v852 = vrot.slane %v851, 2
        %v853 = vadd.f32 %v851, %v852
        %v854 = vrot.slane %v853, 1
        %v855 = vadd.f32 %v853, %v854
        %v856 = vrot.slane %v833, 4
        %v857 = vadd.f32 %v833, %v856
        %v858 = vrot.slane %v857, 2
        %v859 = vadd.f32 %v857, %v858
        %v860 = vrot.slane %v859, 1
        %v861 = vadd.f32 %v859, %v860
        %v862 = vrot.slane %v834, 4
        %v863 = vadd.f32 %v834, %v862
        %v864 = vrot.slane %v863, 2
        %v865 = vadd.f32 %v863, %v864
        %v866 = vrot.slane %v865, 1
        %v867 = vadd.f32 %v865, %v866
        %v868 = vrot.slane %v835, 4
        %v869 = vadd.f32 %v835, %v868
        %v870 = vrot.slane %v869, 2
        %v871 = vadd.f32 %v869, %v870
        %v872 = vrot.slane %v871, 1
        %v873 = vadd.f32 %v871, %v872
        %v874 = vrot.slane %v836, 4
        %v875 = vadd.f32 %v836, %v874
        %v876 = vrot.slane %v875, 2
        %v877 = vadd.f32 %v875, %v876
        %v878 = vrot.slane %v877, 1
        %v879 = vadd.f32 %v877, %v878
        %v880 = vrot.slane %v837, 4
        %v881 = vadd.f32 %v837, %v880
        %v882 = vrot.slane %v881, 2
        %v883 = vadd.f32 %v881, %v882
        %v884 = vrot.slane %v883, 1
        %v885 = vadd.f32 %v883, %v884
        %vm894 = vcmask 1041409
        %v895 = vsel %vm894, %v849, %v843
        %vm896 = vcmask 1042434
        %v897 = vsel %vm896, %v855, %v895
        %vm898 = vcmask 1043459
        %v899 = vsel %vm898, %v861, %v897
        %vm900 = vcmask 1044484
        %v901 = vsel %vm900, %v867, %v899
        %vm902 = vcmask 1045509
        %v903 = vsel %vm902, %v873, %v901
        %vm904 = vcmask 1046534
        %v905 = vsel %vm904, %v879, %v903
        %vm906 = vcmask 1047559
        %v907 = vsel %vm906, %v885, %v905
        %v909 = vadd.f32 %v829, %v907
        %910 = vst [vmem:[#allocation2] sm:$0xff] %v909
        %v911 = vld [vmem:[%s7] sm:$0x1]
        %v912 = vld [vmem:[%s8] sm:$0x1]
        %913 = vadd.xlane.f32.xlu0 %v664
        %v914 = vpop.xlane.xlu0 %913
        %915 = vadd.xlane.f32.xlu0 %v665
        %v916 = vpop.xlane.xlu0 %915
        %917 = vadd.xlane.f32.xlu0 %v666
        %v918 = vpop.xlane.xlu0 %917
        %919 = vadd.xlane.f32.xlu0 %v667
        %v920 = vpop.xlane.xlu0 %919
        %921 = vadd.xlane.f32.xlu0 %v668
        %v922 = vpop.xlane.xlu0 %921
        %923 = vadd.xlane.f32.xlu0 %v669
        %v924 = vpop.xlane.xlu0 %923
        %925 = vadd.xlane.f32.xlu0 %v670
        %v926 = vpop.xlane.xlu0 %925
        %927 = vadd.xlane.f32.xlu0 %v671
        %v928 = vpop.xlane.xlu0 %927
        %v929 = vrcp.pop 128.0
        %v930 = vmul.f32 128.0, %v929
        %v931 = vsub.f32 1.0, %v930
        %v932 = vmul.f32 %v929, %v931
        %v933 = vadd.f32 %v929, %v932
        %vm934 = vweird.f32 %v929
        %v935 = vsel %vm934, %v929, %v933
        %v936 = vmul.f32 %v914, %v935
        %v937 = vmul.f32 %v916, %v935
        %v938 = vmul.f32 %v918, %v935
        %v939 = vmul.f32 %v920, %v935
        %v940 = vmul.f32 %v922, %v935
        %v941 = vmul.f32 %v924, %v935
        %v942 = vmul.f32 %v926, %v935
        %v943 = vmul.f32 %v928, %v935
        %v944 = vmul.f32 %v664, %v664
        %v945 = vmul.f32 %v665, %v665
        %v946 = vmul.f32 %v666, %v666
        %v947 = vmul.f32 %v667, %v667
        %v948 = vmul.f32 %v668, %v668
        %v949 = vmul.f32 %v669, %v669
        %v950 = vmul.f32 %v670, %v670
        %v951 = vmul.f32 %v671, %v671
        %952 = vadd.xlane.f32.xlu0 %v944
        %v953 = vpop.xlane.xlu0 %952
        %954 = vadd.xlane.f32.xlu0 %v945
        %v955 = vpop.xlane.xlu0 %954
        %956 = vadd.xlane.f32.xlu0 %v946
        %v957 = vpop.xlane.xlu0 %956
        %958 = vadd.xlane.f32.xlu0 %v947
        %v959 = vpop.xlane.xlu0 %958
        %960 = vadd.xlane.f32.xlu0 %v948
        %v961 = vpop.xlane.xlu0 %960
        %962 = vadd.xlane.f32.xlu0 %v949
        %v963 = vpop.xlane.xlu0 %962
        %964 = vadd.xlane.f32.xlu0 %v950
        %v965 = vpop.xlane.xlu0 %964
        %966 = vadd.xlane.f32.xlu0 %v951
        %v967 = vpop.xlane.xlu0 %966
        %v968 = vmul.f32 %v953, %v935
        %v969 = vmul.f32 %v955, %v935
        %v970 = vmul.f32 %v957, %v935
        %v971 = vmul.f32 %v959, %v935
        %v972 = vmul.f32 %v961, %v935
        %v973 = vmul.f32 %v963, %v935
        %v974 = vmul.f32 %v965, %v935
        %v975 = vmul.f32 %v967, %v935
        %v976 = vmul.f32 %v936, %v936
        %v977 = vmul.f32 %v937, %v937
        %v978 = vmul.f32 %v938, %v938
        %v979 = vmul.f32 %v939, %v939
        %v980 = vmul.f32 %v940, %v940
        %v981 = vmul.f32 %v941, %v941
        %v982 = vmul.f32 %v942, %v942
        %v983 = vmul.f32 %v943, %v943
        %v984 = vsub.f32 %v968, %v976
        %v985 = vsub.f32 %v969, %v977
        %v986 = vsub.f32 %v970, %v978
        %v987 = vsub.f32 %v971, %v979
        %v988 = vsub.f32 %v972, %v980
        %v989 = vsub.f32 %v973, %v981
        %v990 = vsub.f32 %v974, %v982
        %v991 = vsub.f32 %v975, %v983
        %v992 = vmax.f32 %v984, 0.0
        %v993 = vmax.f32 %v985, 0.0
        %v994 = vmax.f32 %v986, 0.0
        %v995 = vmax.f32 %v987, 0.0
        %v996 = vmax.f32 %v988, 0.0
        %v997 = vmax.f32 %v989, 0.0
        %v998 = vmax.f32 %v990, 0.0
        %v999 = vmax.f32 %v991, 0.0
        %v1000 = vsub.f32 %v664, %v936
        %v1001 = vsub.f32 %v665, %v937
        %v1002 = vsub.f32 %v666, %v938
        %v1003 = vsub.f32 %v667, %v939
        %v1004 = vsub.f32 %v668, %v940
        %v1005 = vsub.f32 %v669, %v941
        %v1006 = vsub.f32 %v670, %v942
        %v1007 = vsub.f32 %v671, %v943
        %v1008 = vadd.f32 %v992, 1e-05
        %v1009 = vadd.f32 %v993, 1e-05
        %v1010 = vadd.f32 %v994, 1e-05
        %v1011 = vadd.f32 %v995, 1e-05
        %v1012 = vadd.f32 %v996, 1e-05
        %v1013 = vadd.f32 %v997, 1e-05
        %v1014 = vadd.f32 %v998, 1e-05
        %v1015 = vadd.f32 %v999, 1e-05
        %v1016 = vrsqrt.pop %v1008
        %v1017 = vmul.f32 %v1016, %v1008
        %v1018 = vmul.f32 %v1017, %v1016
        %v1019 = vmul.f32 0.5, %v1018
        %v1020 = vsub.f32 1.5, %v1019
        %v1021 = vmul.f32 %v1016, %v1020
        %vm1022 = vweird.f32 %v1008
        %vm1023 = vweird.f32 %v1016
        %vm1024 = vmor %vm1022, %vm1023
        %v1025 = vsel %vm1024, %v1016, %v1021
        %v1026 = vrsqrt.pop %v1009
        %v1027 = vmul.f32 %v1026, %v1009
        %v1028 = vmul.f32 %v1027, %v1026
        %v1029 = vmul.f32 0.5, %v1028
        %v1030 = vsub.f32 1.5, %v1029
        %v1031 = vmul.f32 %v1026, %v1030
        %vm1032 = vweird.f32 %v1009
        %vm1033 = vweird.f32 %v1026
        %vm1034 = vmor %vm1032, %vm1033
        %v1035 = vsel %vm1034, %v1026, %v1031
        %v1036 = vrsqrt.pop %v1010
        %v1037 = vmul.f32 %v1036, %v1010
        %v1038 = vmul.f32 %v1037, %v1036
        %v1039 = vmul.f32 0.5, %v1038
        %v1040 = vsub.f32 1.5, %v1039
        %v1041 = vmul.f32 %v1036, %v1040
        %vm1042 = vweird.f32 %v1010
        %vm1043 = vweird.f32 %v1036
        %vm1044 = vmor %vm1042, %vm1043
        %v1045 = vsel %vm1044, %v1036, %v1041
        %v1046 = vrsqrt.pop %v1011
        %v1047 = vmul.f32 %v1046, %v1011
        %v1048 = vmul.f32 %v1047, %v1046
        %v1049 = vmul.f32 0.5, %v1048
        %v1050 = vsub.f32 1.5, %v1049
        %v1051 = vmul.f32 %v1046, %v1050
        %vm1052 = vweird.f32 %v1011
        %vm1053 = vweird.f32 %v1046
        %vm1054 = vmor %vm1052, %vm1053
        %v1055 = vsel %vm1054, %v1046, %v1051
        %v1056 = vrsqrt.pop %v1012
        %v1057 = vmul.f32 %v1056, %v1012
        %v1058 = vmul.f32 %v1057, %v1056
        %v1059 = vmul.f32 0.5, %v1058
        %v1060 = vsub.f32 1.5, %v1059
        %v1061 = vmul.f32 %v1056, %v1060
        %vm1062 = vweird.f32 %v1012
        %vm1063 = vweird.f32 %v1056
        %vm1064 = vmor %vm1062, %vm1063
        %v1065 = vsel %vm1064, %v1056, %v1061
        %v1066 = vrsqrt.pop %v1013
        %v1067 = vmul.f32 %v1066, %v1013
        %v1068 = vmul.f32 %v1067, %v1066
        %v1069 = vmul.f32 0.5, %v1068
        %v1070 = vsub.f32 1.5, %v1069
        %v1071 = vmul.f32 %v1066, %v1070
        %vm1072 = vweird.f32 %v1013
        %vm1073 = vweird.f32 %v1066
        %vm1074 = vmor %vm1072, %vm1073
        %v1075 = vsel %vm1074, %v1066, %v1071
        %v1076 = vrsqrt.pop %v1014
        %v1077 = vmul.f32 %v1076, %v1014
        %v1078 = vmul.f32 %v1077, %v1076
        %v1079 = vmul.f32 0.5, %v1078
        %v1080 = vsub.f32 1.5, %v1079
        %v1081 = vmul.f32 %v1076, %v1080
        %vm1082 = vweird.f32 %v1014
        %vm1083 = vweird.f32 %v1076
        %vm1084 = vmor %vm1082, %vm1083
        %v1085 = vsel %vm1084, %v1076, %v1081
        %v1086 = vrsqrt.pop %v1015
        %v1087 = vmul.f32 %v1086, %v1015
        %v1088 = vmul.f32 %v1087, %v1086
        %v1089 = vmul.f32 0.5, %v1088
        %v1090 = vsub.f32 1.5, %v1089
        %v1091 = vmul.f32 %v1086, %v1090
        %vm1092 = vweird.f32 %v1015
        %vm1093 = vweird.f32 %v1086
        %vm1094 = vmor %vm1092, %vm1093
        %v1095 = vsel %vm1094, %v1086, %v1091
        %v1096 = vmul.f32 %v1000, %v1025
        %v1097 = vmul.f32 %v1001, %v1035
        %v1098 = vmul.f32 %v1002, %v1045
        %v1099 = vmul.f32 %v1003, %v1055
        %v1100 = vmul.f32 %v1004, %v1065
        %v1101 = vmul.f32 %v1005, %v1075
        %v1102 = vmul.f32 %v1006, %v1085
        %v1103 = vmul.f32 %v1007, %v1095
        %v1105 = vperm.slane %v911, 0
        %v1107 = vmul.f32 %v1096, %v1105
        %v1108 = vmul.f32 %v1097, %v1105
        %v1109 = vmul.f32 %v1098, %v1105
        %v1110 = vmul.f32 %v1099, %v1105
        %v1111 = vmul.f32 %v1100, %v1105
        %v1112 = vmul.f32 %v1101, %v1105
        %v1113 = vmul.f32 %v1102, %v1105
        %v1114 = vmul.f32 %v1103, %v1105
        %v1116 = vperm.slane %v912, 0
        %v1118 = vadd.f32 %v1107, %v1116
        %v1119 = vadd.f32 %v1108, %v1116
        %v1120 = vadd.f32 %v1109, %v1116
        %v1121 = vadd.f32 %v1110, %v1116
        %v1122 = vadd.f32 %v1111, %v1116
        %v1123 = vadd.f32 %v1112, %v1116
        %v1124 = vadd.f32 %v1113, %v1116
        %v1125 = vadd.f32 %v1114, %v1116
        %v1126 = vmax.f32 %v1118, 0.0
        %v1127 = vmax.f32 %v1119, 0.0
        %v1128 = vmax.f32 %v1120, 0.0
        %v1129 = vmax.f32 %v1121, 0.0
        %v1130 = vmax.f32 %v1122, 0.0
        %v1131 = vmax.f32 %v1123, 0.0
        %v1132 = vmax.f32 %v1124, 0.0
        %v1133 = vmax.f32 %v1125, 0.0
        %v1134 = vadd.f32 %v567, %v1126
        %v1135 = vadd.f32 %v568, %v1127
        %v1136 = vadd.f32 %v569, %v1128
        %v1137 = vadd.f32 %v570, %v1129
        %v1138 = vadd.f32 %v571, %v1130
        %v1139 = vadd.f32 %v572, %v1131
        %v1140 = vadd.f32 %v573, %v1132
        %v1141 = vadd.f32 %v574, %v1133
        %1142 = vst [vmem:[%s536] sm:$0xff] %v1134
        %1143 = vst [vmem:[%s536 + $0x8] sm:$0xff] %v1135
        %1144 = vst [vmem:[%s536 + $0x10] sm:$0xff] %v1136
        %1145 = vst [vmem:[%s536 + $0x18] sm:$0xff] %v1137
        %1146 = vst [vmem:[%s536 + $0x20] sm:$0xff] %v1138
        %1147 = vst [vmem:[%s536 + $0x28] sm:$0xff] %v1139
        %1148 = vst [vmem:[%s536 + $0x30] sm:$0xff] %v1140
        %1149 = vst [vmem:[%s536 + $0x38] sm:$0xff] %v1141
        %p1150 = scmp.eq.s32.totalorder %s35, 1
        // Predicated region
        $region99: #{_edge_gnn_call.1} parent=89 // pred_check
          %p1151 = pneg %p1150
        $region100: #{_edge_gnn_call.1} parent=89 // pred_check_branch
          %1153 = sbr.rel (%p1151) target = $region102
        $region101: #{_edge_gnn_call.1} parent=89 // pred_region
          %v1154 = vld [vmem:[%s561] sm:$0xff]
          %v1155 = vld [vmem:[#allocation2] sm:$0xff]
          %v1156 = vadd.f32 %v1154, %v1155
          %v1157 = vld [vmem:[%s5] sm:$0x1]
          %v1158 = vld [vmem:[%s6] sm:$0x1]
          %1159 = vadd.xlane.f32.xlu0 %v1156
          %v1160 = vpop.xlane.xlu0 %1159
          %v1161 = vmul.f32 %v1160, %v935
          %v1162 = vmul.f32 %v1156, %v1156
          %1163 = vadd.xlane.f32.xlu0 %v1162
          %v1164 = vpop.xlane.xlu0 %1163
          %v1165 = vmul.f32 %v1164, %v935
          %v1166 = vmul.f32 %v1161, %v1161
          %v1167 = vsub.f32 %v1165, %v1166
          %v1168 = vmax.f32 %v1167, 0.0
          %v1169 = vsub.f32 %v1156, %v1161
          %v1170 = vadd.f32 %v1168, 1e-05
          %v1171 = vrsqrt.pop %v1170
          %v1172 = vmul.f32 %v1171, %v1170
          %v1173 = vmul.f32 %v1172, %v1171
          %v1174 = vmul.f32 0.5, %v1173
          %v1175 = vsub.f32 1.5, %v1174
          %v1176 = vmul.f32 %v1171, %v1175
          %vm1177 = vweird.f32 %v1170
          %vm1178 = vweird.f32 %v1171
          %vm1179 = vmor %vm1177, %vm1178
          %v1180 = vsel %vm1179, %v1171, %v1176
          %v1181 = vmul.f32 %v1169, %v1180
          %v1183 = vperm.slane %v1157, 0
          %v1185 = vmul.f32 %v1181, %v1183
          %v1187 = vperm.slane %v1158, 0
          %v1189 = vadd.f32 %v1185, %v1187
          %v1190 = vmax.f32 %v1189, 0.0
          %v1191 = vadd.f32 %v1154, %v1190
          %1192 = vst [vmem:[%s529] sm:$0xff] %v1191
        $region102: #{_edge_gnn_call.1} parent=89 // pred_fallthru
          _
        %s1193 = sand.u32 %s276, 1
        %s1194 = scalar_lea.sflag [#allocation5], %s1193
        %s1195 = sand.u32 %s276, 1
        %s1196 = smul.addr %s1195, 8
        %s1197 = scalar_lea.vmem [#allocation4], %s1196
        %s1198 = sand.u32 %s306, 1
        %s1199 = scalar_lea.sflag [#allocation7], %s1198
        %s1200 = sand.u32 %s306, 1
        %s1201 = smul.addr %s1200, 64
        %s1202 = scalar_lea.vmem [#allocation6], %s1201
        // Predicated region
        $region103: #{_edge_gnn_call.1} parent=89 // pred_check
          %p1203 = pneg %p286
        $region104: #{_edge_gnn_call.1} parent=89 // pred_check_branch
          %1205 = sbr.rel (%p1203) target = $region106
        $region105: #{_edge_gnn_call.1} parent=89 // pred_region
          %1207 = vsyncadd %s1194, 0
          %s1208 = smul.addr %s33, 2
          %s1209 = sadd.s32 %s34, %s1208
          %s1210 = smul.addr %s1209, 8
          %s1211 = scalar_lea.hbm %s9, %s1210
          %s1213 = sshll.u32 %s1197, 4
          %s1214 = int_to_ptr.vmem [resolvable:$true] %s1213
          %s1215 = sshll.u32 %s1211, 4
          %s1216 = int_to_ptr.hbm [resolvable:$true] %s1215
          %1218 = dma.vmem_to_hbm [thread:$0]  %s1214, 128, %s1216, %s1194
        $region106: #{_edge_gnn_call.1} parent=89 // pred_fallthru
          _
        // Predicated region
        $region107: #{_edge_gnn_call.1} parent=89 // pred_check
          %p1219 = pneg %p316
        $region108: #{_edge_gnn_call.1} parent=89 // pred_check_branch
          %1221 = sbr.rel (%p1219) target = $region110
        $region109: #{_edge_gnn_call.1} parent=89 // pred_region
          %s1222 = smul.u32 8, %s34
          %1224 = vsyncadd %s1199, 0
          %s1225 = smul.addr %s1222, 2
          %s1226 = sadd.s32 %s35, %s1225
          %s1227 = smul.addr %s33, 32
          %s1228 = sadd.s32 %s1226, %s1227
          %s1229 = smul.addr %s1228, 8
          %s1230 = scalar_lea.hbm %s10, %s1229
          %s1231 = sshll.u32 %s1202, 4
          %s1232 = int_to_ptr.vmem [resolvable:$true] %s1231
          %s1233 = sshll.u32 %s1230, 4
          %s1234 = int_to_ptr.hbm [resolvable:$true] %s1233
          %1239 = dma.vmem_to_hbm [thread:$0]  %s1232, 1024, %s1234, %s1199, 128, 256, 8
        $region110: #{_edge_gnn_call.1} parent=89 // pred_fallthru
          _
      $region90: #{_edge_gnn_call.1} parent=5 // pred_fallthru
        _
      %p1240 = scmp.le.s32.totalorder 2, %s23
      // Predicated region
      $region111: #{_edge_gnn_call.1} parent=5 // pred_check
        %p1241 = pneg %p1240
      $region112: #{_edge_gnn_call.1} parent=5 // pred_check_branch
        %1243 = sbr.rel (%p1241) target = $region114
      $region113: #{_edge_gnn_call.1} parent=5 // pred_region
        %s1244 = ssub.s32 %s23, 2
        // Predicated region
        $region115: #{_edge_gnn_call.1} parent=113 // pred_check
          %p1245 = pneg %p292
        $region116: #{_edge_gnn_call.1} parent=113 // pred_check_branch
          %1247 = sbr.rel (%p1245) target = $region118
        $region117: #{_edge_gnn_call.1} parent=113 // pred_region
          %s1248 = sand.u32 %s277, 1
          %s1249 = scalar_lea.sflag [#allocation5], %s1248
          %s1250 = sand.u32 %s277, 1
          %s1251 = smul.addr %s1250, 8
          %s1252 = scalar_lea.vmem [#allocation4], %s1251
          %1254 = dma.done %s1249, 128
        $region118: #{_edge_gnn_call.1} parent=113 // pred_fallthru
          _
        // Predicated region
        $region119: #{_edge_gnn_call.1} parent=113 // pred_check
          %p1255 = pneg %p322
        $region120: #{_edge_gnn_call.1} parent=113 // pred_check_branch
          %1257 = sbr.rel (%p1255) target = $region122
        $region121: #{_edge_gnn_call.1} parent=113 // pred_region
          %s1258 = sand.u32 %s307, 1
          %s1259 = scalar_lea.sflag [#allocation7], %s1258
          %s1260 = sand.u32 %s307, 1
          %s1261 = smul.addr %s1260, 64
          %s1262 = scalar_lea.vmem [#allocation6], %s1261
          %1264 = dma.done %s1259, 1024
        $region122: #{_edge_gnn_call.1} parent=113 // pred_fallthru
          _
      $region114: #{_edge_gnn_call.1} parent=5 // pred_fallthru
        _
    $region6: #{_edge_gnn_call.1} parent=1 // loop_footer
      %s27 = sadd.s32 1, %s23
    $region7: #{_edge_gnn_call.1} parent=1 // loop_footer_branch
      %22 = sbr.rel target = $region3
    $region8: #{_edge_gnn_call.1} parent=1 // loop_exit
      _
    %1265 = vsyncpa [#allocation5], 1
    %s1266 = scalar_lea.sflag [#allocation5], 1
    %1267 = vsyncpa %s1266, 1
    %1268 = vsyncpa [#allocation7], 1
    %s1269 = scalar_lea.sflag [#allocation7], 1
    %1270 = vsyncpa %s1269, 1

</llo_original>
